<compile_context>
chip_gen: v7x
topology: tpu7x:2x2x1
jax: 0.10.0
libtpu: 0.0.40
codegen_flags: <defaults>
</compile_context>

<pallas_src>
import functools

import jax
import jax.numpy as jnp
from jax.experimental import pallas as pl
from jax.experimental.pallas import tpu as pltpu


def _round_up(x, m):
    return (x + m - 1) // m * m


def _padded_bytes(shape, itemsize):
    """Rough VMEM bytes for one buffer of `shape` after (8,128) tiling."""
    s = list(shape)
    s[-1] = _round_up(s[-1], 128)
    if len(s) >= 2:
        s[-2] = _round_up(s[-2], 8)
    n = 1
    for d in s:
        n *= d
    return n * itemsize


def _default_tb():
    # Gen-gate the batch tile: v5e/v6e (128 MiB VMEM) -> 512, v7x (64 MiB per TC) -> 256.
    try:
        vmem = int(getattr(pltpu.get_tpu_info(), "vmem_capacity_bytes", 64 << 20))
    except Exception:
        vmem = 64 << 20
    return 512 if vmem >= (100 << 20) else 256


def _mlp_kernel(x_ref, w0_ref, b0_ref, wl_ref, bl_ref, wf_ref, bf_ref, o_ref,
                *, with_residual):
    cdtype = w0_ref.dtype  # MXU operand dtype (bf16 fast path, or f32)

    # Initial layer: (TB, d_in) @ (d_in, F_pad).  MXU accumulates in f32; bias add and
    # ReLU run in f32 on the VPU (safe on v5e).  h is then held in the matmul-operand
    # dtype between blocks to halve vreg/VMEM pressure.
    h32 = jnp.dot(x_ref[...], w0_ref[...], preferred_element_type=jnp.float32)
    h32 = jnp.maximum(h32 + b0_ref[...], 0.0)
    h = h32.astype(cdtype)

    n_layers = wl_ref.shape[0]

    def body(l, h):
        z = jnp.dot(h, wl_ref[l], preferred_element_type=jnp.float32)
        z = jnp.maximum(z + bl_ref[l], 0.0)          # f32 elementwise
        if with_residual:
            z = h.astype(jnp.float32) + z            # residual add in f32
        return z.astype(cdtype)                      # single cast back per layer

    # Bounded (unrolled) loop instead of a static Python loop: bounded live ranges.
    # TODO(synk): if n_layers * F_pad^2 grows past ~8-16 MiB, stream wl one layer at a
    # time (extra grid axis / pltpu.emit_pipeline) instead of keeping it VMEM-resident.
    h = jax.lax.fori_loop(0, n_layers, body, h, unroll=True)

    out = jnp.dot(h, wf_ref[...], preferred_element_type=jnp.float32) + bf_ref[...]
    o_ref[...] = out.astype(o_ref.dtype)


def temporal_fully_connected(x, params, *, with_residual=True,
                             compute_dtype=jnp.bfloat16, tb=None,
                             single_buffer_weights=True):
    """x: (B, T, C_in).  Returns (B, n_classes) float32 (eval-mode forward).

    compute_dtype is the MXU operand dtype (bf16 default = native fast path on
    v5e/v6e/v7x); accumulation and all elementwise math stay in f32.
    """
    w0, b0, wl, bl, wf, bf = params  # weights stored (in, out) == torch weight^T
    B, T, Cin = x.shape
    d_in = T * Cin
    f_size = w0.shape[1]
    n_classes = wf.shape[1]
    n_layers = wl.shape[0]
    assert w0.shape[0] == d_in and n_layers >= 1

    compute_dtype = jnp.dtype(compute_dtype)
    F_pad = _round_up(f_size, 128)
    C_pad = _round_up(n_classes, 128)

    # Batch tile: multiple of 16 sublanes for 2-byte operands (8 for f32); prefer >= 2
    # grid steps so the "parallel" batch axis actually feeds both v7x TensorCores.
    sub = 16 if compute_dtype.itemsize == 2 else 8
    if tb is None:
        tb = _default_tb()
    TB = max(sub, min(_round_up(tb, sub), _round_up(B, sub)))
    if B > sub and _round_up(B, TB) // TB < 2:
        TB = _round_up(-(-B // 2), sub)
    B_pad = _round_up(B, TB)

    # --- Operands.  x streams unpadded in its feature dim (block last dim == full array
    # dim is legal); only the batch dim is padded to a tile multiple.  Biases are tiny
    # separate f32 operands (no ones-column fold, no padded-x rebuild in HBM). ---
    x_flat = x.reshape(B, d_in)
    if B_pad != B:
        x_flat = jnp.pad(x_flat, ((0, B_pad - B), (0, 0)))
    x_flat = x_flat.astype(compute_dtype)

    f32 = jnp.float32
    w0_p = jnp.zeros((d_in, F_pad), f32).at[:, :f_size].set(w0.astype(f32)).astype(compute_dtype)
    wl_p = jnp.zeros((n_layers, F_pad, F_pad), f32).at[:, :f_size, :f_size].set(
        wl.astype(f32)).astype(compute_dtype)
    wf_p = jnp.zeros((F_pad, C_pad), f32).at[:f_size, :n_classes].set(
        wf.astype(f32)).astype(compute_dtype)
    b0_p = jnp.zeros((1, F_pad), f32).at[0, :f_size].set(b0.reshape(-1).astype(f32))
    bl_p = jnp.zeros((n_layers, 1, F_pad), f32).at[:, 0, :f_size].set(
        bl.reshape(n_layers, f_size).astype(f32))
    bf_p = jnp.zeros((1, C_pad), f32).at[0, :n_classes].set(bf.reshape(-1).astype(f32))

    # --- Explicit VMEM budget: x/out tiles double-buffered, weights single-buffered. ---
    cb = compute_dtype.itemsize
    w_bufs = 1 if single_buffer_weights else 2
    vmem_need = (
        2 * _padded_bytes((TB, d_in), cb)
        + 2 * _padded_bytes((TB, C_pad), 4)
        + w_bufs * (_padded_bytes((d_in, F_pad), cb)
                    + _padded_bytes((n_layers, F_pad, F_pad), cb)
                    + _padded_bytes((F_pad, C_pad), cb)
                    + _padded_bytes((1, F_pad), 4)
                    + _padded_bytes((n_layers, 1, F_pad), 4)
                    + _padded_bytes((1, C_pad), 4))
        + 3 * _padded_bytes((TB, F_pad), 4)            # h / z live-value headroom
    )
    vmem_limit = int(min(max(vmem_need * 5 // 4, 32 << 20), 128 << 20))

    grid = (B_pad // TB,)
    out_shape = jax.ShapeDtypeStruct((B_pad, C_pad), jnp.float32)
    kernel = functools.partial(_mlp_kernel, with_residual=with_residual)

    def _run(use_single_buffer):
        # Constant-index weights stay VMEM-resident across grid steps; single-buffer
        # them so v7x's 64 MiB VMEM isn't spent on a useless second copy.
        wkw = {"pipeline_mode": pl.Buffered(1)} if use_single_buffer else {}
        in_specs = [
            pl.BlockSpec((TB, d_in), lambda i: (i, 0)),                            # x: batch-tiled
            pl.BlockSpec((d_in, F_pad), lambda i: (0, 0), **wkw),                  # W0
            pl.BlockSpec((1, F_pad), lambda i: (0, 0), **wkw),                     # b0
            pl.BlockSpec((n_layers, F_pad, F_pad), lambda i: (0, 0, 0), **wkw),    # Wl
            pl.BlockSpec((n_layers, 1, F_pad), lambda i: (0, 0, 0), **wkw),        # bl
            pl.BlockSpec((F_pad, C_pad), lambda i: (0, 0), **wkw),                 # Wf
            pl.BlockSpec((1, C_pad), lambda i: (0, 0), **wkw),                     # bf
        ]
        return pl.pallas_call(
            kernel,
            out_shape=out_shape,
            grid=grid,
            in_specs=in_specs,
            out_specs=pl.BlockSpec((TB, C_pad), lambda i: (i, 0)),
            compiler_params=pltpu.CompilerParams(
                dimension_semantics=("parallel",),     # megacore shards the batch axis
                vmem_limit_bytes=vmem_limit),
        )(x_flat, w0_p, b0_p, wl_p, bl_p, wf_p, bf_p)

    if single_buffer_weights:
        try:
            out = _run(True)
        except Exception:
            # jax build without BlockSpec.pipeline_mode support -> fall back to default
            # double buffering (correctness identical).
            out = _run(False)
    else:
        out = _run(False)

    return out[:B, :n_classes]


def init_params(key, *, n_layers, f_size, n_classes, input_size, temporal_length):
    """Deterministic synthetic parameters matching the torch module's shapes.
    Weights stored as (in, out) == torch weight transposed."""
    d_in = temporal_length * input_size
    keys = jax.random.split(key, 6)
    scale = 0.1
    w0 = scale * jax.random.normal(keys[0], (d_in, f_size), jnp.float32)
    b0 = scale * jax.random.normal(keys[1], (1, f_size), jnp.float32)
    wl = scale * jax.random.normal(keys[2], (n_layers, f_size, f_size), jnp.float32)
    bl = scale * jax.random.normal(keys[3], (n_layers, 1, f_size), jnp.float32)
    wf = scale * jax.random.normal(keys[4], (f_size, n_classes), jnp.float32)
    bf = scale * jax.random.normal(keys[5], (1, n_classes), jnp.float32)
    return (w0, b0, wl, bl, wf, bf)


def reference_forward(x, params, with_residual=True):
    """Pure-JAX reference (eval mode) for verification."""
    w0, b0, wl, bl, wf, bf = params
    h = x.reshape(x.shape[0], -1)
    h = jnp.maximum(h @ w0 + b0, 0.0)
    for l in range(wl.shape[0]):
        z = jnp.maximum(h @ wl[l] + bl[l], 0.0)
        h = h + z if with_residual else z
    return h @ wf + bf


if __name__ == "__main__":
    # Small shapes consistent with the module's forward:
    # batch=8, temporal_length=16, input_size=1, f_size=32, n_classes=4, n_layers=4
    B, T, C_IN = 8, 16, 1
    N_LAYERS, F_SIZE, N_CLASSES = 4, 32, 4

    key = jax.random.PRNGKey(0)
    kx, kp = jax.random.split(key)
    x = jax.random.normal(kx, (B, T, C_IN), jnp.float32)
    params = init_params(kp, n_layers=N_LAYERS, f_size=F_SIZE,
                         n_classes=N_CLASSES, input_size=C_IN,
                         temporal_length=T)

    ref = reference_forward(x, params)

    # f32 MXU-operand path.
    out_f32 = jax.block_until_ready(
        temporal_fully_connected(x, params, compute_dtype=jnp.float32))
    assert out_f32.shape == (B, N_CLASSES)
    assert jnp.allclose(out_f32, ref, atol=2e-2, rtol=2e-2), "f32 mismatch vs reference"

    # Default path: bf16 MXU operands (native fast path), f32 accumulation.
    out_bf16 = jax.block_until_ready(temporal_fully_connected(x, params))
    assert out_bf16.shape == (B, N_CLASSES)
    assert jnp.allclose(out_bf16, ref, atol=5e-2, rtol=5e-2), "bf16 mismatch vs reference"

    print("KERNEL_OK")
</pallas_src>

<mosaic_0001>
module attributes {stable_mosaic.version = 11 : i64} {
  func.func @_mlp_kernel(%arg0: i32, %arg1: memref<8x16xf32, #tpu.memory_space<vmem>>, %arg2: memref<16x128xf32, #tpu.memory_space<vmem>>, %arg3: memref<1x128xf32, #tpu.memory_space<vmem>>, %arg4: memref<4x128x128xf32, #tpu.memory_space<vmem>>, %arg5: memref<4x1x128xf32, #tpu.memory_space<vmem>>, %arg6: memref<128x128xf32, #tpu.memory_space<vmem>>, %arg7: memref<1x128xf32, #tpu.memory_space<vmem>>, %arg8: memref<8x128xf32, #tpu.memory_space<vmem>>) attributes {dimension_semantics = [#tpu.dimension_semantics<parallel>], iteration_bounds = array<i64: 1>, scalar_prefetch = 0 : i64, scratch_operands = 0 : i64, tpu.core_type = #tpu.core_type<tc>, window_params = [{transform_indices = @transform_0, window_bounds = array<i64: 8, 16>}, {pipeline_mode = #tpu.pipeline_mode<synchronous>, transform_indices = @transform_1, window_bounds = array<i64: 16, 128>}, {pipeline_mode = #tpu.pipeline_mode<synchronous>, transform_indices = @transform_2, window_bounds = array<i64: 1, 128>}, {pipeline_mode = #tpu.pipeline_mode<synchronous>, transform_indices = @transform_3, window_bounds = array<i64: 4, 128, 128>}, {pipeline_mode = #tpu.pipeline_mode<synchronous>, transform_indices = @transform_4, window_bounds = array<i64: 4, 1, 128>}, {pipeline_mode = #tpu.pipeline_mode<synchronous>, transform_indices = @transform_5, window_bounds = array<i64: 128, 128>}, {pipeline_mode = #tpu.pipeline_mode<synchronous>, transform_indices = @transform_6, window_bounds = array<i64: 1, 128>}, {transform_indices = @transform_7, window_bounds = array<i64: 8, 128>}]} {
    %c0 = arith.constant 0 : index
    %c0_0 = arith.constant 0 : index
    %0 = vector.load %arg1[%c0, %c0_0] : memref<8x16xf32, #tpu.memory_space<vmem>>, vector<8x16xf32>
    %c0_1 = arith.constant 0 : index
    %c0_2 = arith.constant 0 : index
    %1 = vector.load %arg2[%c0_1, %c0_2] : memref<16x128xf32, #tpu.memory_space<vmem>>, vector<16x128xf32>
    %cst = arith.constant dense<0.000000e+00> : vector<8x128xf32>
    %2 = tpu.matmul %0, %1, %cst {dimension_numbers = #tpu.dot_dimension_numbers<[1], [0], [0], [1], [0, 0, 1, 1], [], []>} : vector<8x16xf32>, vector<16x128xf32>, vector<8x128xf32> -> vector<8x128xf32>
    %c0_3 = arith.constant 0 : index
    %c0_4 = arith.constant 0 : index
    %3 = vector.load %arg3[%c0_3, %c0_4] : memref<1x128xf32, #tpu.memory_space<vmem>>, vector<1x128xf32>
    %4 = vector.broadcast %3 : vector<1x128xf32> to vector<8x128xf32>
    %5 = arith.addf %2, %4 : vector<8x128xf32>
    %cst_5 = arith.constant 0.000000e+00 : f32
    %6 = vector.broadcast %cst_5 : f32 to vector<8x128xf32>
    %7 = arith.maximumf %5, %6 : vector<8x128xf32>
    %c0_i32 = arith.constant 0 : i32
    %8 = arith.index_cast %c0_i32 : i32 to index
    %c0_6 = arith.constant 0 : index
    %c0_7 = arith.constant 0 : index
    %9 = vector.load %arg4[%8, %c0_6, %c0_7] : memref<4x128x128xf32, #tpu.memory_space<vmem>>, vector<1x128x128xf32>
    %10 = vector.shape_cast %9 : vector<1x128x128xf32> to vector<128x128xf32>
    %cst_8 = arith.constant dense<0.000000e+00> : vector<8x128xf32>
    %11 = tpu.matmul %7, %10, %cst_8 {dimension_numbers = #tpu.dot_dimension_numbers<[1], [0], [0], [1], [0, 0, 1, 1], [], []>} : vector<8x128xf32>, vector<128x128xf32>, vector<8x128xf32> -> vector<8x128xf32>
    %12 = arith.index_cast %c0_i32 : i32 to index
    %c0_9 = arith.constant 0 : index
    %c0_10 = arith.constant 0 : index
    %13 = vector.load %arg5[%12, %c0_9, %c0_10] : memref<4x1x128xf32, #tpu.memory_space<vmem>>, vector<1x1x128xf32>
    %14 = vector.shape_cast %13 : vector<1x1x128xf32> to vector<1x128xf32>
    %15 = vector.broadcast %14 : vector<1x128xf32> to vector<8x128xf32>
    %16 = arith.addf %11, %15 : vector<8x128xf32>
    %cst_11 = arith.constant 0.000000e+00 : f32
    %17 = vector.broadcast %cst_11 : f32 to vector<8x128xf32>
    %18 = arith.maximumf %16, %17 : vector<8x128xf32>
    %19 = arith.addf %7, %18 : vector<8x128xf32>
    %c1_i32 = arith.constant 1 : i32
    %20 = arith.index_cast %c1_i32 : i32 to index
    %c0_12 = arith.constant 0 : index
    %c0_13 = arith.constant 0 : index
    %21 = vector.load %arg4[%20, %c0_12, %c0_13] : memref<4x128x128xf32, #tpu.memory_space<vmem>>, vector<1x128x128xf32>
    %22 = vector.shape_cast %21 : vector<1x128x128xf32> to vector<128x128xf32>
    %cst_14 = arith.constant dense<0.000000e+00> : vector<8x128xf32>
    %23 = tpu.matmul %19, %22, %cst_14 {dimension_numbers = #tpu.dot_dimension_numbers<[1], [0], [0], [1], [0, 0, 1, 1], [], []>} : vector<8x128xf32>, vector<128x128xf32>, vector<8x128xf32> -> vector<8x128xf32>
    %24 = arith.index_cast %c1_i32 : i32 to index
    %c0_15 = arith.constant 0 : index
    %c0_16 = arith.constant 0 : index
    %25 = vector.load %arg5[%24, %c0_15, %c0_16] : memref<4x1x128xf32, #tpu.memory_space<vmem>>, vector<1x1x128xf32>
    %26 = vector.shape_cast %25 : vector<1x1x128xf32> to vector<1x128xf32>
    %27 = vector.broadcast %26 : vector<1x128xf32> to vector<8x128xf32>
    %28 = arith.addf %23, %27 : vector<8x128xf32>
    %cst_17 = arith.constant 0.000000e+00 : f32
    %29 = vector.broadcast %cst_17 : f32 to vector<8x128xf32>
    %30 = arith.maximumf %28, %29 : vector<8x128xf32>
    %31 = arith.addf %19, %30 : vector<8x128xf32>
    %c2_i32 = arith.constant 2 : i32
    %32 = arith.index_cast %c2_i32 : i32 to index
    %c0_18 = arith.constant 0 : index
    %c0_19 = arith.constant 0 : index
    %33 = vector.load %arg4[%32, %c0_18, %c0_19] : memref<4x128x128xf32, #tpu.memory_space<vmem>>, vector<1x128x128xf32>
    %34 = vector.shape_cast %33 : vector<1x128x128xf32> to vector<128x128xf32>
    %cst_20 = arith.constant dense<0.000000e+00> : vector<8x128xf32>
    %35 = tpu.matmul %31, %34, %cst_20 {dimension_numbers = #tpu.dot_dimension_numbers<[1], [0], [0], [1], [0, 0, 1, 1], [], []>} : vector<8x128xf32>, vector<128x128xf32>, vector<8x128xf32> -> vector<8x128xf32>
    %36 = arith.index_cast %c2_i32 : i32 to index
    %c0_21 = arith.constant 0 : index
    %c0_22 = arith.constant 0 : index
    %37 = vector.load %arg5[%36, %c0_21, %c0_22] : memref<4x1x128xf32, #tpu.memory_space<vmem>>, vector<1x1x128xf32>
    %38 = vector.shape_cast %37 : vector<1x1x128xf32> to vector<1x128xf32>
    %39 = vector.broadcast %38 : vector<1x128xf32> to vector<8x128xf32>
    %40 = arith.addf %35, %39 : vector<8x128xf32>
    %cst_23 = arith.constant 0.000000e+00 : f32
    %41 = vector.broadcast %cst_23 : f32 to vector<8x128xf32>
    %42 = arith.maximumf %40, %41 : vector<8x128xf32>
    %43 = arith.addf %31, %42 : vector<8x128xf32>
    %c3_i32 = arith.constant 3 : i32
    %44 = arith.index_cast %c3_i32 : i32 to index
    %c0_24 = arith.constant 0 : index
    %c0_25 = arith.constant 0 : index
    %45 = vector.load %arg4[%44, %c0_24, %c0_25] : memref<4x128x128xf32, #tpu.memory_space<vmem>>, vector<1x128x128xf32>
    %46 = vector.shape_cast %45 : vector<1x128x128xf32> to vector<128x128xf32>
    %cst_26 = arith.constant dense<0.000000e+00> : vector<8x128xf32>
    %47 = tpu.matmul %43, %46, %cst_26 {dimension_numbers = #tpu.dot_dimension_numbers<[1], [0], [0], [1], [0, 0, 1, 1], [], []>} : vector<8x128xf32>, vector<128x128xf32>, vector<8x128xf32> -> vector<8x128xf32>
    %48 = arith.index_cast %c3_i32 : i32 to index
    %c0_27 = arith.constant 0 : index
    %c0_28 = arith.constant 0 : index
    %49 = vector.load %arg5[%48, %c0_27, %c0_28] : memref<4x1x128xf32, #tpu.memory_space<vmem>>, vector<1x1x128xf32>
    %50 = vector.shape_cast %49 : vector<1x1x128xf32> to vector<1x128xf32>
    %51 = vector.broadcast %50 : vector<1x128xf32> to vector<8x128xf32>
    %52 = arith.addf %47, %51 : vector<8x128xf32>
    %cst_29 = arith.constant 0.000000e+00 : f32
    %53 = vector.broadcast %cst_29 : f32 to vector<8x128xf32>
    %54 = arith.maximumf %52, %53 : vector<8x128xf32>
    %55 = arith.addf %43, %54 : vector<8x128xf32>
    %c4_i32 = arith.constant 4 : i32
    %c0_30 = arith.constant 0 : index
    %c0_31 = arith.constant 0 : index
    %56 = vector.load %arg6[%c0_30, %c0_31] : memref<128x128xf32, #tpu.memory_space<vmem>>, vector<128x128xf32>
    %cst_32 = arith.constant dense<0.000000e+00> : vector<8x128xf32>
    %57 = tpu.matmul %55, %56, %cst_32 {dimension_numbers = #tpu.dot_dimension_numbers<[1], [0], [0], [1], [0, 0, 1, 1], [], []>} : vector<8x128xf32>, vector<128x128xf32>, vector<8x128xf32> -> vector<8x128xf32>
    %c0_33 = arith.constant 0 : index
    %c0_34 = arith.constant 0 : index
    %58 = vector.load %arg7[%c0_33, %c0_34] : memref<1x128xf32, #tpu.memory_space<vmem>>, vector<1x128xf32>
    %59 = vector.broadcast %58 : vector<1x128xf32> to vector<8x128xf32>
    %60 = arith.addf %57, %59 : vector<8x128xf32>
    %c0_35 = arith.constant 0 : index
    %c0_36 = arith.constant 0 : index
    %61 = vector.load %arg8[%c0_35, %c0_36] : memref<8x128xf32, #tpu.memory_space<vmem>>, vector<8x128xf32>
    tpu.vector_store %arg8[%c0_35, %c0_36], %60 {strides = array<i32>} : memref<8x128xf32, #tpu.memory_space<vmem>>, vector<8x128xf32>,
    return
  }
  func.func @transform_0(%arg0: i32) -> (i32, i32) {
    %c0_i32 = arith.constant 0 : i32
    %c0_i32_0 = arith.constant 0 : i32
    return %arg0, %c0_i32 : i32, i32
  }
  func.func @transform_1(%arg0: i32) -> (i32, i32) {
    %c0_i32 = arith.constant 0 : i32
    %c0_i32_0 = arith.constant 0 : i32
    %c0_i32_1 = arith.constant 0 : i32
    return %c0_i32, %c0_i32_0 : i32, i32
  }
  func.func @transform_2(%arg0: i32) -> (i32, i32) {
    %c0_i32 = arith.constant 0 : i32
    %c0_i32_0 = arith.constant 0 : i32
    %c0_i32_1 = arith.constant 0 : i32
    return %c0_i32, %c0_i32_0 : i32, i32
  }
  func.func @transform_3(%arg0: i32) -> (i32, i32, i32) {
    %c0_i32 = arith.constant 0 : i32
    %c0_i32_0 = arith.constant 0 : i32
    %c0_i32_1 = arith.constant 0 : i32
    %c0_i32_2 = arith.constant 0 : i32
    return %c0_i32, %c0_i32_0, %c0_i32_1 : i32, i32, i32
  }
  func.func @transform_4(%arg0: i32) -> (i32, i32, i32) {
    %c0_i32 = arith.constant 0 : i32
    %c0_i32_0 = arith.constant 0 : i32
    %c0_i32_1 = arith.constant 0 : i32
    %c0_i32_2 = arith.constant 0 : i32
    return %c0_i32, %c0_i32_0, %c0_i32_1 : i32, i32, i32
  }
  func.func @transform_5(%arg0: i32) -> (i32, i32) {
    %c0_i32 = arith.constant 0 : i32
    %c0_i32_0 = arith.constant 0 : i32
    %c0_i32_1 = arith.constant 0 : i32
    return %c0_i32, %c0_i32_0 : i32, i32
  }
  func.func @transform_6(%arg0: i32) -> (i32, i32) {
    %c0_i32 = arith.constant 0 : i32
    %c0_i32_0 = arith.constant 0 : i32
    %c0_i32_1 = arith.constant 0 : i32
    return %c0_i32, %c0_i32_0 : i32, i32
  }
  func.func @transform_7(%arg0: i32) -> (i32, i32) {
    %c0_i32 = arith.constant 0 : i32
    %c0_i32_0 = arith.constant 0 : i32
    return %arg0, %c0_i32 : i32, i32
  }
}

module attributes {stable_mosaic.version = 11 : i64} {
  func.func @_mlp_kernel(%arg0: i32, %arg1: memref<8x16xf32, #tpu.memory_space<vmem>>, %arg2: memref<16x128xf32, #tpu.memory_space<vmem>>, %arg3: memref<1x128xf32, #tpu.memory_space<vmem>>, %arg4: memref<4x128x128xf32, #tpu.memory_space<vmem>>, %arg5: memref<4x1x128xf32, #tpu.memory_space<vmem>>, %arg6: memref<128x128xf32, #tpu.memory_space<vmem>>, %arg7: memref<1x128xf32, #tpu.memory_space<vmem>>, %arg8: memref<8x128xf32, #tpu.memory_space<vmem>>) attributes {dimension_semantics = [#tpu.dimension_semantics<parallel>], iteration_bounds = array<i64: 1>, scalar_prefetch = 0 : i64, scratch_operands = 0 : i64, tpu.core_type = #tpu.core_type<tc>, window_params = [{transform_indices = @transform_0, window_bounds = array<i64: 8, 16>}, {pipeline_mode = #tpu.pipeline_mode<synchronous>, transform_indices = @transform_1, window_bounds = array<i64: 16, 128>}, {pipeline_mode = #tpu.pipeline_mode<synchronous>, transform_indices = @transform_2, window_bounds = array<i64: 1, 128>}, {pipeline_mode = #tpu.pipeline_mode<synchronous>, transform_indices = @transform_3, window_bounds = array<i64: 4, 128, 128>}, {pipeline_mode = #tpu.pipeline_mode<synchronous>, transform_indices = @transform_4, window_bounds = array<i64: 4, 1, 128>}, {pipeline_mode = #tpu.pipeline_mode<synchronous>, transform_indices = @transform_5, window_bounds = array<i64: 128, 128>}, {pipeline_mode = #tpu.pipeline_mode<synchronous>, transform_indices = @transform_6, window_bounds = array<i64: 1, 128>}, {transform_indices = @transform_7, window_bounds = array<i64: 8, 128>}]} {
    %c0 = arith.constant 0 : index
    %c0_0 = arith.constant 0 : index
    %0 = vector.load %arg1[%c0, %c0_0] : memref<8x16xf32, #tpu.memory_space<vmem>>, vector<8x16xf32>
    %c0_1 = arith.constant 0 : index
    %c0_2 = arith.constant 0 : index
    %1 = vector.load %arg2[%c0_1, %c0_2] : memref<16x128xf32, #tpu.memory_space<vmem>>, vector<16x128xf32>
    %cst = arith.constant dense<0.000000e+00> : vector<8x128xf32>
    %2 = tpu.matmul %0, %1, %cst {dimension_numbers = #tpu.dot_dimension_numbers<[1], [0], [0], [1], [0, 0, 1, 1], [], []>} : vector<8x16xf32>, vector<16x128xf32>, vector<8x128xf32> -> vector<8x128xf32>
    %c0_3 = arith.constant 0 : index
    %c0_4 = arith.constant 0 : index
    %3 = vector.load %arg3[%c0_3, %c0_4] : memref<1x128xf32, #tpu.memory_space<vmem>>, vector<1x128xf32>
    %4 = vector.broadcast %3 : vector<1x128xf32> to vector<8x128xf32>
    %5 = arith.addf %2, %4 : vector<8x128xf32>
    %cst_5 = arith.constant 0.000000e+00 : f32
    %6 = vector.broadcast %cst_5 : f32 to vector<8x128xf32>
    %7 = arith.maximumf %5, %6 : vector<8x128xf32>
    %c0_i32 = arith.constant 0 : i32
    %8 = arith.index_cast %c0_i32 : i32 to index
    %c0_6 = arith.constant 0 : index
    %c0_7 = arith.constant 0 : index
    %9 = vector.load %arg4[%8, %c0_6, %c0_7] : memref<4x128x128xf32, #tpu.memory_space<vmem>>, vector<1x128x128xf32>
    %10 = vector.shape_cast %9 : vector<1x128x128xf32> to vector<128x128xf32>
    %cst_8 = arith.constant dense<0.000000e+00> : vector<8x128xf32>
    %11 = tpu.matmul %7, %10, %cst_8 {dimension_numbers = #tpu.dot_dimension_numbers<[1], [0], [0], [1], [0, 0, 1, 1], [], []>} : vector<8x128xf32>, vector<128x128xf32>, vector<8x128xf32> -> vector<8x128xf32>
    %12 = arith.index_cast %c0_i32 : i32 to index
    %c0_9 = arith.constant 0 : index
    %c0_10 = arith.constant 0 : index
    %13 = vector.load %arg5[%12, %c0_9, %c0_10] : memref<4x1x128xf32, #tpu.memory_space<vmem>>, vector<1x1x128xf32>
    %14 = vector.shape_cast %13 : vector<1x1x128xf32> to vector<1x128xf32>
    %15 = vector.broadcast %14 : vector<1x128xf32> to vector<8x128xf32>
    %16 = arith.addf %11, %15 : vector<8x128xf32>
    %cst_11 = arith.constant 0.000000e+00 : f32
    %17 = vector.broadcast %cst_11 : f32 to vector<8x128xf32>
    %18 = arith.maximumf %16, %17 : vector<8x128xf32>
    %19 = arith.addf %7, %18 : vector<8x128xf32>
    %c1_i32 = arith.constant 1 : i32
    %20 = arith.index_cast %c1_i32 : i32 to index
    %c0_12 = arith.constant 0 : index
    %c0_13 = arith.constant 0 : index
    %21 = vector.load %arg4[%20, %c0_12, %c0_13] : memref<4x128x128xf32, #tpu.memory_space<vmem>>, vector<1x128x128xf32>
    %22 = vector.shape_cast %21 : vector<1x128x128xf32> to vector<128x128xf32>
    %cst_14 = arith.constant dense<0.000000e+00> : vector<8x128xf32>
    %23 = tpu.matmul %19, %22, %cst_14 {dimension_numbers = #tpu.dot_dimension_numbers<[1], [0], [0], [1], [0, 0, 1, 1], [], []>} : vector<8x128xf32>, vector<128x128xf32>, vector<8x128xf32> -> vector<8x128xf32>
    %24 = arith.index_cast %c1_i32 : i32 to index
    %c0_15 = arith.constant 0 : index
    %c0_16 = arith.constant 0 : index
    %25 = vector.load %arg5[%24, %c0_15, %c0_16] : memref<4x1x128xf32, #tpu.memory_space<vmem>>, vector<1x1x128xf32>
    %26 = vector.shape_cast %25 : vector<1x1x128xf32> to vector<1x128xf32>
    %27 = vector.broadcast %26 : vector<1x128xf32> to vector<8x128xf32>
    %28 = arith.addf %23, %27 : vector<8x128xf32>
    %cst_17 = arith.constant 0.000000e+00 : f32
    %29 = vector.broadcast %cst_17 : f32 to vector<8x128xf32>
    %30 = arith.maximumf %28, %29 : vector<8x128xf32>
    %31 = arith.addf %19, %30 : vector<8x128xf32>
    %c2_i32 = arith.constant 2 : i32
    %32 = arith.index_cast %c2_i32 : i32 to index
    %c0_18 = arith.constant 0 : index
    %c0_19 = arith.constant 0 : index
    %33 = vector.load %arg4[%32, %c0_18, %c0_19] : memref<4x128x128xf32, #tpu.memory_space<vmem>>, vector<1x128x128xf32>
    %34 = vector.shape_cast %33 : vector<1x128x128xf32> to vector<128x128xf32>
    %cst_20 = arith.constant dense<0.000000e+00> : vector<8x128xf32>
    %35 = tpu.matmul %31, %34, %cst_20 {dimension_numbers = #tpu.dot_dimension_numbers<[1], [0], [0], [1], [0, 0, 1, 1], [], []>} : vector<8x128xf32>, vector<128x128xf32>, vector<8x128xf32> -> vector<8x128xf32>
    %36 = arith.index_cast %c2_i32 : i32 to index
    %c0_21 = arith.constant 0 : index
    %c0_22 = arith.constant 0 : index
    %37 = vector.load %arg5[%36, %c0_21, %c0_22] : memref<4x1x128xf32, #tpu.memory_space<vmem>>, vector<1x1x128xf32>
    %38 = vector.shape_cast %37 : vector<1x1x128xf32> to vector<1x128xf32>
    %39 = vector.broadcast %38 : vector<1x128xf32> to vector<8x128xf32>
    %40 = arith.addf %35, %39 : vector<8x128xf32>
    %cst_23 = arith.constant 0.000000e+00 : f32
    %41 = vector.broadcast %cst_23 : f32 to vector<8x128xf32>
    %42 = arith.maximumf %40, %41 : vector<8x128xf32>
    %43 = arith.addf %31, %42 : vector<8x128xf32>
    %c3_i32 = arith.constant 3 : i32
    %44 = arith.index_cast %c3_i32 : i32 to index
    %c0_24 = arith.constant 0 : index
    %c0_25 = arith.constant 0 : index
    %45 = vector.load %arg4[%44, %c0_24, %c0_25] : memref<4x128x128xf32, #tpu.memory_space<vmem>>, vector<1x128x128xf32>
    %46 = vector.shape_cast %45 : vector<1x128x128xf32> to vector<128x128xf32>
    %cst_26 = arith.constant dense<0.000000e+00> : vector<8x128xf32>
    %47 = tpu.matmul %43, %46, %cst_26 {dimension_numbers = #tpu.dot_dimension_numbers<[1], [0], [0], [1], [0, 0, 1, 1], [], []>} : vector<8x128xf32>, vector<128x128xf32>, vector<8x128xf32> -> vector<8x128xf32>
    %48 = arith.index_cast %c3_i32 : i32 to index
    %c0_27 = arith.constant 0 : index
    %c0_28 = arith.constant 0 : index
    %49 = vector.load %arg5[%48, %c0_27, %c0_28] : memref<4x1x128xf32, #tpu.memory_space<vmem>>, vector<1x1x128xf32>
    %50 = vector.shape_cast %49 : vector<1x1x128xf32> to vector<1x128xf32>
    %51 = vector.broadcast %50 : vector<1x128xf32> to vector<8x128xf32>
    %52 = arith.addf %47, %51 : vector<8x128xf32>
    %cst_29 = arith.constant 0.000000e+00 : f32
    %53 = vector.broadcast %cst_29 : f32 to vector<8x128xf32>
    %54 = arith.maximumf %52, %53 : vector<8x128xf32>
    %55 = arith.addf %43, %54 : vector<8x128xf32>
    %c4_i32 = arith.constant 4 : i32
    %c0_30 = arith.constant 0 : index
    %c0_31 = arith.constant 0 : index
    %56 = vector.load %arg6[%c0_30, %c0_31] : memref<128x128xf32, #tpu.memory_space<vmem>>, vector<128x128xf32>
    %cst_32 = arith.constant dense<0.000000e+00> : vector<8x128xf32>
    %57 = tpu.matmul %55, %56, %cst_32 {dimension_numbers = #tpu.dot_dimension_numbers<[1], [0], [0], [1], [0, 0, 1, 1], [], []>} : vector<8x128xf32>, vector<128x128xf32>, vector<8x128xf32> -> vector<8x128xf32>
    %c0_33 = arith.constant 0 : index
    %c0_34 = arith.constant 0 : index
    %58 = vector.load %arg7[%c0_33, %c0_34] : memref<1x128xf32, #tpu.memory_space<vmem>>, vector<1x128xf32>
    %59 = vector.broadcast %58 : vector<1x128xf32> to vector<8x128xf32>
    %60 = arith.addf %57, %59 : vector<8x128xf32>
    %c0_35 = arith.constant 0 : index
    %c0_36 = arith.constant 0 : index
    %61 = vector.load %arg8[%c0_35, %c0_36] : memref<8x128xf32, #tpu.memory_space<vmem>>, vector<8x128xf32>
    tpu.vector_store %arg8[%c0_35, %c0_36], %60 {strides = array<i32>} : memref<8x128xf32, #tpu.memory_space<vmem>>, vector<8x128xf32>,
    return
  }
  func.func @transform_0(%arg0: i32) -> (i32, i32) {
    %c0_i32 = arith.constant 0 : i32
    %c0_i32_0 = arith.constant 0 : i32
    return %arg0, %c0_i32 : i32, i32
  }
  func.func @transform_1(%arg0: i32) -> (i32, i32) {
    %c0_i32 = arith.constant 0 : i32
    %c0_i32_0 = arith.constant 0 : i32
    %c0_i32_1 = arith.constant 0 : i32
    return %c0_i32, %c0_i32_0 : i32, i32
  }
  func.func @transform_2(%arg0: i32) -> (i32, i32) {
    %c0_i32 = arith.constant 0 : i32
    %c0_i32_0 = arith.constant 0 : i32
    %c0_i32_1 = arith.constant 0 : i32
    return %c0_i32, %c0_i32_0 : i32, i32
  }
  func.func @transform_3(%arg0: i32) -> (i32, i32, i32) {
    %c0_i32 = arith.constant 0 : i32
    %c0_i32_0 = arith.constant 0 : i32
    %c0_i32_1 = arith.constant 0 : i32
    %c0_i32_2 = arith.constant 0 : i32
    return %c0_i32, %c0_i32_0, %c0_i32_1 : i32, i32, i32
  }
  func.func @transform_4(%arg0: i32) -> (i32, i32, i32) {
    %c0_i32 = arith.constant 0 : i32
    %c0_i32_0 = arith.constant 0 : i32
    %c0_i32_1 = arith.constant 0 : i32
    %c0_i32_2 = arith.constant 0 : i32
    return %c0_i32, %c0_i32_0, %c0_i32_1 : i32, i32, i32
  }
  func.func @transform_5(%arg0: i32) -> (i32, i32) {
    %c0_i32 = arith.constant 0 : i32
    %c0_i32_0 = arith.constant 0 : i32
    %c0_i32_1 = arith.constant 0 : i32
    return %c0_i32, %c0_i32_0 : i32, i32
  }
  func.func @transform_6(%arg0: i32) -> (i32, i32) {
    %c0_i32 = arith.constant 0 : i32
    %c0_i32_0 = arith.constant 0 : i32
    %c0_i32_1 = arith.constant 0 : i32
    return %c0_i32, %c0_i32_0 : i32, i32
  }
  func.func @transform_7(%arg0: i32) -> (i32, i32) {
    %c0_i32 = arith.constant 0 : i32
    %c0_i32_0 = arith.constant 0 : i32
    return %arg0, %c0_i32 : i32, i32
  }
}

</mosaic_0001>

<llo_original>
// kernel: tpu_custom_call.1
$region0: #{tpu_custom_call.1}
  #allocation0 [shape = 'u32[]', space=smem, size = 0x4, offset = 0x4, fixed_abs, tag = 'smem constant byte address 0x4 - core index']
  #allocation1 [shape = 'u32[144,128]{1,0:T(1,128)}', space=vmem, size = 0x12000, scoped, tag = 'internal scratch']
  %s0 = inlined_call_operand.hbm [shape: f32[8,16], index: 0, kind: input, shape index: {}]
  %s1 = inlined_call_operand.hbm [shape: f32[16,128], index: 1, kind: input, shape index: {}]
  %s2 = inlined_call_operand.vmem [shape: f32[1,128], index: 2, kind: input, shape index: {}]
  %s3 = inlined_call_operand.hbm [shape: f32[4,128,128], index: 3, kind: input, shape index: {}]
  %s4 = inlined_call_operand.vmem [shape: f32[4,1,128], index: 4, kind: input, shape index: {}]
  %s5 = inlined_call_operand.hbm [shape: f32[128,128], index: 5, kind: input, shape index: {}]
  %s6 = inlined_call_operand.vmem [shape: f32[1,128], index: 6, kind: input, shape index: {}]
  %s7 = inlined_call_operand.hbm [shape: f32[8,128], index: 7, kind: output, shape index: {}]
  %s8 = sld [smem:[#allocation0]]
  $region54: #{tpu_custom_call.1} parent=0
    _
  %s10 = ssub.s32 1, %s8
  %s11 = scalar_select 0, %s10, %s8
  $region1: #{tpu_custom_call.1} parent=0
    #allocation2 [shape = 'u8[4096]{0}', space=vmem, size = 0x1000, scoped, tag = 'input window, operand 0, single buffered']
    #allocation3 [shape = 's32[1]{0}', space=sflag, size = 0x4, scoped, tag = 'scoped memory for tpu_custom_call.1']
    #allocation4 [shape = 's32[1]{0}', space=sflag, size = 0x4, scoped, tag = 'scoped memory for tpu_custom_call.1']
    #allocation5 [shape = 'u8[8192]{0}', space=vmem, size = 0x2000, scoped, tag = 'input window, operand 1, single buffered']
    #allocation6 [shape = 's32[1]{0}', space=sflag, size = 0x4, scoped, tag = 'scoped memory for tpu_custom_call.1']
    #allocation7 [shape = 'u8[262144]{0}', space=vmem, size = 0x40000, scoped, tag = 'input window, operand 3, single buffered']
    #allocation8 [shape = 'u8[65536]{0}', space=vmem, size = 0x10000, scoped, tag = 'input window, operand 5, single buffered']
    #allocation9 [shape = 's32[1]{0}', space=sflag, size = 0x4, scoped, tag = 'scoped memory for tpu_custom_call.1']
    #allocation10 [shape = 'u8[4096]{0}', space=vmem, size = 0x1000, scoped, tag = 'output window, operand 0, single buffered']
    %12 = vsyncpa [#allocation3], 0
    %13 = vsyncpa [#allocation6], 0
    %14 = vsyncpa [#allocation9], 0
    %15 = vsyncpa [#allocation4], 0
    // Predicated region
    $region2: #{tpu_custom_call.1} parent=1 // pred_check
      _
    $region3: #{tpu_custom_call.1} parent=1 // pred_check_branch
      %17 = sbr.rel (0) target = $region5
    $region4: #{tpu_custom_call.1} parent=1 // pred_region
      %s19 = ssub.s32 128, 128
      %20 = vsyncadd [#allocation3], %s19
      %s22 = sshll.u32 [#allocation2], 4
      %s23 = int_to_ptr.vmem [resolvable:$true] %s22
      %25 = dma.hbm_to_vmem [thread:$0]  %s0, 128, %s23, [#allocation3]
    $region5: #{tpu_custom_call.1} parent=1 // pred_fallthru
      _
    // Predicated region
    $region6: #{tpu_custom_call.1} parent=1 // pred_check
      _
    $region7: #{tpu_custom_call.1} parent=1 // pred_check_branch
      %27 = sbr.rel (0) target = $region9
    $region8: #{tpu_custom_call.1} parent=1 // pred_region
      %s29 = ssub.s32 256, 256
      %30 = vsyncadd [#allocation6], %s29
      %s31 = sshll.u32 [#allocation5], 4
      %s32 = int_to_ptr.vmem [resolvable:$true] %s31
      %37 = dma.hbm_to_vmem [thread:$0]  %s1, 256, %s32, [#allocation6], 128, 128, 8
    $region9: #{tpu_custom_call.1} parent=1 // pred_fallthru
      _
    // Predicated region
    $region10: #{tpu_custom_call.1} parent=1 // pred_check
      _
    $region11: #{tpu_custom_call.1} parent=1 // pred_check_branch
      %39 = sbr.rel (0) target = $region13
    $region12: #{tpu_custom_call.1} parent=1 // pred_region
      _
    $region13: #{tpu_custom_call.1} parent=1 // pred_fallthru
      _
    // Predicated region
    $region14: #{tpu_custom_call.1} parent=1 // pred_check
      _
    $region15: #{tpu_custom_call.1} parent=1 // pred_check_branch
      %41 = sbr.rel (0) target = $region17
    $region16: #{tpu_custom_call.1} parent=1 // pred_region
      %s43 = ssub.s32 8192, 8192
      %44 = vsyncadd [#allocation6], %s43
      %s45 = sshll.u32 [#allocation7], 4
      %s46 = int_to_ptr.vmem [resolvable:$true] %s45
      %51 = dma.hbm_to_vmem [thread:$0]  %s3, 8192, %s46, [#allocation6], 128, 128, 8
    $region17: #{tpu_custom_call.1} parent=1 // pred_fallthru
      _
    // Predicated region
    $region18: #{tpu_custom_call.1} parent=1 // pred_check
      _
    $region19: #{tpu_custom_call.1} parent=1 // pred_check_branch
      %53 = sbr.rel (0) target = $region21
    $region20: #{tpu_custom_call.1} parent=1 // pred_region
      _
    $region21: #{tpu_custom_call.1} parent=1 // pred_fallthru
      _
    // Predicated region
    $region22: #{tpu_custom_call.1} parent=1 // pred_check
      _
    $region23: #{tpu_custom_call.1} parent=1 // pred_check_branch
      %55 = sbr.rel (0) target = $region25
    $region24: #{tpu_custom_call.1} parent=1 // pred_region
      %s57 = ssub.s32 2048, 2048
      %58 = vsyncadd [#allocation9], %s57
      %s59 = sshll.u32 [#allocation8], 4
      %s60 = int_to_ptr.vmem [resolvable:$true] %s59
      %65 = dma.hbm_to_vmem [thread:$0]  %s5, 2048, %s60, [#allocation9], 128, 128, 8
    $region25: #{tpu_custom_call.1} parent=1 // pred_fallthru
      _
    // Predicated region
    $region26: #{tpu_custom_call.1} parent=1 // pred_check
      _
    $region27: #{tpu_custom_call.1} parent=1 // pred_check_branch
      %67 = sbr.rel (0) target = $region29
    $region28: #{tpu_custom_call.1} parent=1 // pred_region
      _
    $region29: #{tpu_custom_call.1} parent=1 // pred_fallthru
      _
    // Predicated region
    $region30: #{tpu_custom_call.1} parent=1 // pred_check
      _
    $region31: #{tpu_custom_call.1} parent=1 // pred_check_branch
      %69 = sbr.rel (0) target = $region33
    $region32: #{tpu_custom_call.1} parent=1 // pred_region
      %70 = dma.done [#allocation3], 128
    $region33: #{tpu_custom_call.1} parent=1 // pred_fallthru
      _
    // Predicated region
    $region34: #{tpu_custom_call.1} parent=1 // pred_check
      _
    $region35: #{tpu_custom_call.1} parent=1 // pred_check_branch
      %72 = sbr.rel (0) target = $region37
    $region36: #{tpu_custom_call.1} parent=1 // pred_region
      %73 = dma.done [#allocation6], 256
    $region37: #{tpu_custom_call.1} parent=1 // pred_fallthru
      _
    // Predicated region
    $region38: #{tpu_custom_call.1} parent=1 // pred_check
      _
    $region39: #{tpu_custom_call.1} parent=1 // pred_check_branch
      %75 = sbr.rel (0) target = $region41
    $region40: #{tpu_custom_call.1} parent=1 // pred_region
      %76 = dma.done [#allocation6], 8192
    $region41: #{tpu_custom_call.1} parent=1 // pred_fallthru
      _
    // Predicated region
    $region42: #{tpu_custom_call.1} parent=1 // pred_check
      _
    $region43: #{tpu_custom_call.1} parent=1 // pred_check_branch
      %78 = sbr.rel (0) target = $region45
    $region44: #{tpu_custom_call.1} parent=1 // pred_region
      %79 = dma.done [#allocation9], 2048
    $region45: #{tpu_custom_call.1} parent=1 // pred_fallthru
      _
    %v80 = vld [vmem:[#allocation2] sm:$0xff]
    %v81 = vld [vmem:[#allocation5] sm:$0xff]
    %v82 = vld [vmem:[#allocation5 + $0x8] sm:$0xff]
    %v83 = vld [vmem:[%s2] sm:$0x1]
    %v85 = vlaneseq
    %v86 = vshrl.u32 %v85, 7
    %v87 = vsub.s32 0, %v86
    %v88 = vrot.slane %v83, %v87
    %vm90 = vcmask 130048
    %v92 = vsel %vm90, %v80, 0
    %94 = vmatprep.subr.mxu0 0.0
    %95 = vmatpush1.msra.mxu0 %v81
    %96 = vmatprep.subr.mxu0 0.0
    %97 = vmatpush1.msra.mxu0 %v82
    %98 = vmatprep.subr.mxu0 0.0
    %99 = vmatpush1.msra.mxu0 0.0
    %100 = vmatprep.subr.mxu0 0.0
    %101 = vmatpush1.msra.mxu0 0.0
    %102 = vmatprep.subr.mxu0 0.0
    %103 = vmatpush1.msra.mxu0 0.0
    %104 = vmatprep.subr.mxu0 0.0
    %105 = vmatpush1.msra.mxu0 0.0
    %106 = vmatprep.subr.mxu0 0.0
    %107 = vmatpush1.msra.mxu0 0.0
    %108 = vmatprep.subr.mxu0 0.0
    %109 = vmatpush1.msra.mxu0 0.0
    %110 = vmatprep.subr.mxu0 0.0
    %111 = vmatpush1.msra.mxu0 0.0
    %112 = vmatprep.subr.mxu0 0.0
    %113 = vmatpush1.msra.mxu0 0.0
    %114 = vmatprep.subr.mxu0 0.0
    %115 = vmatpush1.msra.mxu0 0.0
    %116 = vmatprep.subr.mxu0 0.0
    %117 = vmatpush1.msra.mxu0 0.0
    %118 = vmatprep.subr.mxu0 0.0
    %119 = vmatpush1.msra.mxu0 0.0
    %120 = vmatprep.subr.mxu0 0.0
    %121 = vmatpush1.msra.mxu0 0.0
    %122 = vmatprep.subr.mxu0 0.0
    %123 = vmatpush1.msra.mxu0 0.0
    %124 = vmatprep.subr.mxu0 0.0
    %125 = vmatpush1.msra.mxu0 0.0
    %126 = vmatprep.subr.mxu0 0.0
    %127 = vmatpush1.msra.mxu0 0.0
    %128 = vmatprep.subr.mxu0 0.0
    %129 = vmatpush1.msra.mxu0 0.0
    %130 = vmatprep.subr.mxu0 0.0
    %131 = vmatpush1.msra.mxu0 0.0
    %132 = vmatprep.subr.mxu0 0.0
    %133 = vmatpush1.msra.mxu0 0.0
    %134 = vmatprep.subr.mxu0 0.0
    %135 = vmatpush1.msra.mxu0 0.0
    %136 = vmatprep.subr.mxu0 0.0
    %137 = vmatpush1.msra.mxu0 0.0
    %138 = vmatprep.subr.mxu0 0.0
    %139 = vmatpush1.msra.mxu0 0.0
    %140 = vmatprep.subr.mxu0 0.0
    %141 = vmatpush1.msra.mxu0 0.0
    %142 = vmatprep.subr.mxu0 0.0
    %143 = vmatpush1.msra.mxu0 0.0
    %144 = vmatprep.subr.mxu0 0.0
    %145 = vmatpush1.msra.mxu0 0.0
    %146 = vmatprep.subr.mxu0 0.0
    %147 = vmatpush1.msra.mxu0 0.0
    %148 = vmatprep.subr.mxu0 0.0
    %149 = vmatpush1.msra.mxu0 0.0
    %150 = vmatprep.subr.mxu0 0.0
    %151 = vmatpush1.msra.mxu0 0.0
    %152 = vmatprep.subr.mxu0 0.0
    %153 = vmatpush1.msra.mxu0 0.0
    %154 = vmatprep.subr.mxu0 0.0
    %155 = vmatpush1.msra.mxu0 0.0
    %156 = vmatprep.subr.mxu0 0.0
    %157 = vmatpush1.msra.mxu0 0.0
    %158 = vmatprep.mubr.f32.mxu0 0.0
    %159 = vmatmul.mubr.f32.gmra.mrb[0].mxu0 %v92
    %v160 = vpop.f32.mrb[0].mxu0
    %v161 = vadd.f32 %v88, %v160
    %v162 = vpop.f32.mrb[0].mxu0
    %163 = vdwg.mxu0
    %v164 = vmax.f32 %v161, 0.0
    %v165 = vld [vmem:[#allocation7] sm:$0xff]
    %v166 = vld [vmem:[#allocation7 + $0x8] sm:$0xff]
    %v167 = vld [vmem:[#allocation7 + $0x10] sm:$0xff]
    %v168 = vld [vmem:[#allocation7 + $0x18] sm:$0xff]
    %v169 = vld [vmem:[#allocation7 + $0x20] sm:$0xff]
    %v170 = vld [vmem:[#allocation7 + $0x28] sm:$0xff]
    %v171 = vld [vmem:[#allocation7 + $0x30] sm:$0xff]
    %v172 = vld [vmem:[#allocation7 + $0x38] sm:$0xff]
    %v173 = vld [vmem:[#allocation7 + $0x40] sm:$0xff]
    %v174 = vld [vmem:[#allocation7 + $0x48] sm:$0xff]
    %v175 = vld [vmem:[#allocation7 + $0x50] sm:$0xff]
    %v176 = vld [vmem:[#allocation7 + $0x58] sm:$0xff]
    %v177 = vld [vmem:[#allocation7 + $0x60] sm:$0xff]
    %v178 = vld [vmem:[#allocation7 + $0x68] sm:$0xff]
    %v179 = vld [vmem:[#allocation7 + $0x70] sm:$0xff]
    %v180 = vld [vmem:[#allocation7 + $0x78] sm:$0xff]
    %v181 = vld [vmem:[%s4] sm:$0x1]
    %v183 = vlaneseq
    %v184 = vshrl.u32 %v183, 7
    %v185 = vsub.s32 0, %v184
    %v186 = vrot.slane %v181, %v185
    %188 = vmatprep.subr.mxu0 0.0
    %189 = vmatpush1.msra.mxu0 %v165
    %190 = vmatprep.subr.mxu0 0.0
    %191 = vmatpush1.msra.mxu0 %v166
    %192 = vmatprep.subr.mxu0 0.0
    %193 = vmatpush1.msra.mxu0 %v167
    %194 = vmatprep.subr.mxu0 0.0
    %195 = vmatpush1.msra.mxu0 %v168
    %196 = vmatprep.subr.mxu0 0.0
    %197 = vmatpush1.msra.mxu0 %v169
    %198 = vmatprep.subr.mxu0 0.0
    %199 = vmatpush1.msra.mxu0 %v170
    %200 = vmatprep.subr.mxu0 0.0
    %201 = vmatpush1.msra.mxu0 %v171
    %202 = vmatprep.subr.mxu0 0.0
    %203 = vmatpush1.msra.mxu0 %v172
    %204 = vmatprep.subr.mxu0 0.0
    %205 = vmatpush1.msra.mxu0 %v173
    %206 = vmatprep.subr.mxu0 0.0
    %207 = vmatpush1.msra.mxu0 %v174
    %208 = vmatprep.subr.mxu0 0.0
    %209 = vmatpush1.msra.mxu0 %v175
    %210 = vmatprep.subr.mxu0 0.0
    %211 = vmatpush1.msra.mxu0 %v176
    %212 = vmatprep.subr.mxu0 0.0
    %213 = vmatpush1.msra.mxu0 %v177
    %214 = vmatprep.subr.mxu0 0.0
    %215 = vmatpush1.msra.mxu0 %v178
    %216 = vmatprep.subr.mxu0 0.0
    %217 = vmatpush1.msra.mxu0 %v179
    %218 = vmatprep.subr.mxu0 0.0
    %219 = vmatpush1.msra.mxu0 %v180
    %220 = vmatprep.subr.mxu0 0.0
    %221 = vmatpush1.msra.mxu0 0.0
    %222 = vmatprep.subr.mxu0 0.0
    %223 = vmatpush1.msra.mxu0 0.0
    %224 = vmatprep.subr.mxu0 0.0
    %225 = vmatpush1.msra.mxu0 0.0
    %226 = vmatprep.subr.mxu0 0.0
    %227 = vmatpush1.msra.mxu0 0.0
    %228 = vmatprep.subr.mxu0 0.0
    %229 = vmatpush1.msra.mxu0 0.0
    %230 = vmatprep.subr.mxu0 0.0
    %231 = vmatpush1.msra.mxu0 0.0
    %232 = vmatprep.subr.mxu0 0.0
    %233 = vmatpush1.msra.mxu0 0.0
    %234 = vmatprep.subr.mxu0 0.0
    %235 = vmatpush1.msra.mxu0 0.0
    %236 = vmatprep.subr.mxu0 0.0
    %237 = vmatpush1.msra.mxu0 0.0
    %238 = vmatprep.subr.mxu0 0.0
    %239 = vmatpush1.msra.mxu0 0.0
    %240 = vmatprep.subr.mxu0 0.0
    %241 = vmatpush1.msra.mxu0 0.0
    %242 = vmatprep.subr.mxu0 0.0
    %243 = vmatpush1.msra.mxu0 0.0
    %244 = vmatprep.subr.mxu0 0.0
    %245 = vmatpush1.msra.mxu0 0.0
    %246 = vmatprep.subr.mxu0 0.0
    %247 = vmatpush1.msra.mxu0 0.0
    %248 = vmatprep.subr.mxu0 0.0
    %249 = vmatpush1.msra.mxu0 0.0
    %250 = vmatprep.subr.mxu0 0.0
    %251 = vmatpush1.msra.mxu0 0.0
    %252 = vmatprep.mubr.f32.mxu0 0.0
    %253 = vmatmul.mubr.f32.gmra.mrb[0].mxu0 %v164
    %v254 = vpop.f32.mrb[0].mxu0
    %v255 = vadd.f32 %v186, %v254
    %v256 = vpop.f32.mrb[0].mxu0
    %257 = vdwg.mxu0
    %v258 = vmax.f32 %v255, 0.0
    %v259 = vadd.f32 %v164, %v258
    %s260 = scalar_lea.vmem [#allocation7], 128
    %v261 = vld [vmem:[%s260] sm:$0xff]
    %v262 = vld [vmem:[%s260 + $0x8] sm:$0xff]
    %v263 = vld [vmem:[%s260 + $0x10] sm:$0xff]
    %v264 = vld [vmem:[%s260 + $0x18] sm:$0xff]
    %v265 = vld [vmem:[%s260 + $0x20] sm:$0xff]
    %v266 = vld [vmem:[%s260 + $0x28] sm:$0xff]
    %v267 = vld [vmem:[%s260 + $0x30] sm:$0xff]
    %v268 = vld [vmem:[%s260 + $0x38] sm:$0xff]
    %v269 = vld [vmem:[%s260 + $0x40] sm:$0xff]
    %v270 = vld [vmem:[%s260 + $0x48] sm:$0xff]
    %v271 = vld [vmem:[%s260 + $0x50] sm:$0xff]
    %v272 = vld [vmem:[%s260 + $0x58] sm:$0xff]
    %v273 = vld [vmem:[%s260 + $0x60] sm:$0xff]
    %v274 = vld [vmem:[%s260 + $0x68] sm:$0xff]
    %v275 = vld [vmem:[%s260 + $0x70] sm:$0xff]
    %v276 = vld [vmem:[%s260 + $0x78] sm:$0xff]
    %s277 = scalar_lea.vmem %s4, 1
    %v278 = vld [vmem:[%s277] sm:$0x1]
    %v280 = vlaneseq
    %v281 = vshrl.u32 %v280, 7
    %v282 = vsub.s32 0, %v281
    %v283 = vrot.slane %v278, %v282
    %285 = vmatprep.subr.mxu0 0.0
    %286 = vmatpush1.msra.mxu0 %v261
    %287 = vmatprep.subr.mxu0 0.0
    %288 = vmatpush1.msra.mxu0 %v262
    %289 = vmatprep.subr.mxu0 0.0
    %290 = vmatpush1.msra.mxu0 %v263
    %291 = vmatprep.subr.mxu0 0.0
    %292 = vmatpush1.msra.mxu0 %v264
    %293 = vmatprep.subr.mxu0 0.0
    %294 = vmatpush1.msra.mxu0 %v265
    %295 = vmatprep.subr.mxu0 0.0
    %296 = vmatpush1.msra.mxu0 %v266
    %297 = vmatprep.subr.mxu0 0.0
    %298 = vmatpush1.msra.mxu0 %v267
    %299 = vmatprep.subr.mxu0 0.0
    %300 = vmatpush1.msra.mxu0 %v268
    %301 = vmatprep.subr.mxu0 0.0
    %302 = vmatpush1.msra.mxu0 %v269
    %303 = vmatprep.subr.mxu0 0.0
    %304 = vmatpush1.msra.mxu0 %v270
    %305 = vmatprep.subr.mxu0 0.0
    %306 = vmatpush1.msra.mxu0 %v271
    %307 = vmatprep.subr.mxu0 0.0
    %308 = vmatpush1.msra.mxu0 %v272
    %309 = vmatprep.subr.mxu0 0.0
    %310 = vmatpush1.msra.mxu0 %v273
    %311 = vmatprep.subr.mxu0 0.0
    %312 = vmatpush1.msra.mxu0 %v274
    %313 = vmatprep.subr.mxu0 0.0
    %314 = vmatpush1.msra.mxu0 %v275
    %315 = vmatprep.subr.mxu0 0.0
    %316 = vmatpush1.msra.mxu0 %v276
    %317 = vmatprep.subr.mxu0 0.0
    %318 = vmatpush1.msra.mxu0 0.0
    %319 = vmatprep.subr.mxu0 0.0
    %320 = vmatpush1.msra.mxu0 0.0
    %321 = vmatprep.subr.mxu0 0.0
    %322 = vmatpush1.msra.mxu0 0.0
    %323 = vmatprep.subr.mxu0 0.0
    %324 = vmatpush1.msra.mxu0 0.0
    %325 = vmatprep.subr.mxu0 0.0
    %326 = vmatpush1.msra.mxu0 0.0
    %327 = vmatprep.subr.mxu0 0.0
    %328 = vmatpush1.msra.mxu0 0.0
    %329 = vmatprep.subr.mxu0 0.0
    %330 = vmatpush1.msra.mxu0 0.0
    %331 = vmatprep.subr.mxu0 0.0
    %332 = vmatpush1.msra.mxu0 0.0
    %333 = vmatprep.subr.mxu0 0.0
    %334 = vmatpush1.msra.mxu0 0.0
    %335 = vmatprep.subr.mxu0 0.0
    %336 = vmatpush1.msra.mxu0 0.0
    %337 = vmatprep.subr.mxu0 0.0
    %338 = vmatpush1.msra.mxu0 0.0
    %339 = vmatprep.subr.mxu0 0.0
    %340 = vmatpush1.msra.mxu0 0.0
    %341 = vmatprep.subr.mxu0 0.0
    %342 = vmatpush1.msra.mxu0 0.0
    %343 = vmatprep.subr.mxu0 0.0
    %344 = vmatpush1.msra.mxu0 0.0
    %345 = vmatprep.subr.mxu0 0.0
    %346 = vmatpush1.msra.mxu0 0.0
    %347 = vmatprep.subr.mxu0 0.0
    %348 = vmatpush1.msra.mxu0 0.0
    %349 = vmatprep.mubr.f32.mxu0 0.0
    %350 = vmatmul.mubr.f32.gmra.mrb[0].mxu0 %v259
    %v351 = vpop.f32.mrb[0].mxu0
    %v352 = vadd.f32 %v283, %v351
    %v353 = vpop.f32.mrb[0].mxu0
    %354 = vdwg.mxu0
    %v355 = vmax.f32 %v352, 0.0
    %v356 = vadd.f32 %v259, %v355
    %s357 = scalar_lea.vmem [#allocation7], 256
    %v358 = vld [vmem:[%s357] sm:$0xff]
    %v359 = vld [vmem:[%s357 + $0x8] sm:$0xff]
    %v360 = vld [vmem:[%s357 + $0x10] sm:$0xff]
    %v361 = vld [vmem:[%s357 + $0x18] sm:$0xff]
    %v362 = vld [vmem:[%s357 + $0x20] sm:$0xff]
    %v363 = vld [vmem:[%s357 + $0x28] sm:$0xff]
    %v364 = vld [vmem:[%s357 + $0x30] sm:$0xff]
    %v365 = vld [vmem:[%s357 + $0x38] sm:$0xff]
    %v366 = vld [vmem:[%s357 + $0x40] sm:$0xff]
    %v367 = vld [vmem:[%s357 + $0x48] sm:$0xff]
    %v368 = vld [vmem:[%s357 + $0x50] sm:$0xff]
    %v369 = vld [vmem:[%s357 + $0x58] sm:$0xff]
    %v370 = vld [vmem:[%s357 + $0x60] sm:$0xff]
    %v371 = vld [vmem:[%s357 + $0x68] sm:$0xff]
    %v372 = vld [vmem:[%s357 + $0x70] sm:$0xff]
    %v373 = vld [vmem:[%s357 + $0x78] sm:$0xff]
    %s374 = scalar_lea.vmem %s4, 2
    %v375 = vld [vmem:[%s374] sm:$0x1]
    %v377 = vlaneseq
    %v378 = vshrl.u32 %v377, 7
    %v379 = vsub.s32 0, %v378
    %v380 = vrot.slane %v375, %v379
    %382 = vmatprep.subr.mxu0 0.0
    %383 = vmatpush1.msra.mxu0 %v358
    %384 = vmatprep.subr.mxu0 0.0
    %385 = vmatpush1.msra.mxu0 %v359
    %386 = vmatprep.subr.mxu0 0.0
    %387 = vmatpush1.msra.mxu0 %v360
    %388 = vmatprep.subr.mxu0 0.0
    %389 = vmatpush1.msra.mxu0 %v361
    %390 = vmatprep.subr.mxu0 0.0
    %391 = vmatpush1.msra.mxu0 %v362
    %392 = vmatprep.subr.mxu0 0.0
    %393 = vmatpush1.msra.mxu0 %v363
    %394 = vmatprep.subr.mxu0 0.0
    %395 = vmatpush1.msra.mxu0 %v364
    %396 = vmatprep.subr.mxu0 0.0
    %397 = vmatpush1.msra.mxu0 %v365
    %398 = vmatprep.subr.mxu0 0.0
    %399 = vmatpush1.msra.mxu0 %v366
    %400 = vmatprep.subr.mxu0 0.0
    %401 = vmatpush1.msra.mxu0 %v367
    %402 = vmatprep.subr.mxu0 0.0
    %403 = vmatpush1.msra.mxu0 %v368
    %404 = vmatprep.subr.mxu0 0.0
    %405 = vmatpush1.msra.mxu0 %v369
    %406 = vmatprep.subr.mxu0 0.0
    %407 = vmatpush1.msra.mxu0 %v370
    %408 = vmatprep.subr.mxu0 0.0
    %409 = vmatpush1.msra.mxu0 %v371
    %410 = vmatprep.subr.mxu0 0.0
    %411 = vmatpush1.msra.mxu0 %v372
    %412 = vmatprep.subr.mxu0 0.0
    %413 = vmatpush1.msra.mxu0 %v373
    %414 = vmatprep.subr.mxu0 0.0
    %415 = vmatpush1.msra.mxu0 0.0
    %416 = vmatprep.subr.mxu0 0.0
    %417 = vmatpush1.msra.mxu0 0.0
    %418 = vmatprep.subr.mxu0 0.0
    %419 = vmatpush1.msra.mxu0 0.0
    %420 = vmatprep.subr.mxu0 0.0
    %421 = vmatpush1.msra.mxu0 0.0
    %422 = vmatprep.subr.mxu0 0.0
    %423 = vmatpush1.msra.mxu0 0.0
    %424 = vmatprep.subr.mxu0 0.0
    %425 = vmatpush1.msra.mxu0 0.0
    %426 = vmatprep.subr.mxu0 0.0
    %427 = vmatpush1.msra.mxu0 0.0
    %428 = vmatprep.subr.mxu0 0.0
    %429 = vmatpush1.msra.mxu0 0.0
    %430 = vmatprep.subr.mxu0 0.0
    %431 = vmatpush1.msra.mxu0 0.0
    %432 = vmatprep.subr.mxu0 0.0
    %433 = vmatpush1.msra.mxu0 0.0
    %434 = vmatprep.subr.mxu0 0.0
    %435 = vmatpush1.msra.mxu0 0.0
    %436 = vmatprep.subr.mxu0 0.0
    %437 = vmatpush1.msra.mxu0 0.0
    %438 = vmatprep.subr.mxu0 0.0
    %439 = vmatpush1.msra.mxu0 0.0
    %440 = vmatprep.subr.mxu0 0.0
    %441 = vmatpush1.msra.mxu0 0.0
    %442 = vmatprep.subr.mxu0 0.0
    %443 = vmatpush1.msra.mxu0 0.0
    %444 = vmatprep.subr.mxu0 0.0
    %445 = vmatpush1.msra.mxu0 0.0
    %446 = vmatprep.mubr.f32.mxu0 0.0
    %447 = vmatmul.mubr.f32.gmra.mrb[0].mxu0 %v356
    %v448 = vpop.f32.mrb[0].mxu0
    %v449 = vadd.f32 %v380, %v448
    %v450 = vpop.f32.mrb[0].mxu0
    %451 = vdwg.mxu0
    %v452 = vmax.f32 %v449, 0.0
    %v453 = vadd.f32 %v356, %v452
    %s454 = scalar_lea.vmem [#allocation7], 384
    %v455 = vld [vmem:[%s454] sm:$0xff]
    %v456 = vld [vmem:[%s454 + $0x8] sm:$0xff]
    %v457 = vld [vmem:[%s454 + $0x10] sm:$0xff]
    %v458 = vld [vmem:[%s454 + $0x18] sm:$0xff]
    %v459 = vld [vmem:[%s454 + $0x20] sm:$0xff]
    %v460 = vld [vmem:[%s454 + $0x28] sm:$0xff]
    %v461 = vld [vmem:[%s454 + $0x30] sm:$0xff]
    %v462 = vld [vmem:[%s454 + $0x38] sm:$0xff]
    %v463 = vld [vmem:[%s454 + $0x40] sm:$0xff]
    %v464 = vld [vmem:[%s454 + $0x48] sm:$0xff]
    %v465 = vld [vmem:[%s454 + $0x50] sm:$0xff]
    %v466 = vld [vmem:[%s454 + $0x58] sm:$0xff]
    %v467 = vld [vmem:[%s454 + $0x60] sm:$0xff]
    %v468 = vld [vmem:[%s454 + $0x68] sm:$0xff]
    %v469 = vld [vmem:[%s454 + $0x70] sm:$0xff]
    %v470 = vld [vmem:[%s454 + $0x78] sm:$0xff]
    %s471 = scalar_lea.vmem %s4, 3
    %v472 = vld [vmem:[%s471] sm:$0x1]
    %v474 = vlaneseq
    %v475 = vshrl.u32 %v474, 7
    %v476 = vsub.s32 0, %v475
    %v477 = vrot.slane %v472, %v476
    %479 = vmatprep.subr.mxu0 0.0
    %480 = vmatpush1.msra.mxu0 %v455
    %481 = vmatprep.subr.mxu0 0.0
    %482 = vmatpush1.msra.mxu0 %v456
    %483 = vmatprep.subr.mxu0 0.0
    %484 = vmatpush1.msra.mxu0 %v457
    %485 = vmatprep.subr.mxu0 0.0
    %486 = vmatpush1.msra.mxu0 %v458
    %487 = vmatprep.subr.mxu0 0.0
    %488 = vmatpush1.msra.mxu0 %v459
    %489 = vmatprep.subr.mxu0 0.0
    %490 = vmatpush1.msra.mxu0 %v460
    %491 = vmatprep.subr.mxu0 0.0
    %492 = vmatpush1.msra.mxu0 %v461
    %493 = vmatprep.subr.mxu0 0.0
    %494 = vmatpush1.msra.mxu0 %v462
    %495 = vmatprep.subr.mxu0 0.0
    %496 = vmatpush1.msra.mxu0 %v463
    %497 = vmatprep.subr.mxu0 0.0
    %498 = vmatpush1.msra.mxu0 %v464
    %499 = vmatprep.subr.mxu0 0.0
    %500 = vmatpush1.msra.mxu0 %v465
    %501 = vmatprep.subr.mxu0 0.0
    %502 = vmatpush1.msra.mxu0 %v466
    %503 = vmatprep.subr.mxu0 0.0
    %504 = vmatpush1.msra.mxu0 %v467
    %505 = vmatprep.subr.mxu0 0.0
    %506 = vmatpush1.msra.mxu0 %v468
    %507 = vmatprep.subr.mxu0 0.0
    %508 = vmatpush1.msra.mxu0 %v469
    %509 = vmatprep.subr.mxu0 0.0
    %510 = vmatpush1.msra.mxu0 %v470
    %511 = vmatprep.subr.mxu0 0.0
    %512 = vmatpush1.msra.mxu0 0.0
    %513 = vmatprep.subr.mxu0 0.0
    %514 = vmatpush1.msra.mxu0 0.0
    %515 = vmatprep.subr.mxu0 0.0
    %516 = vmatpush1.msra.mxu0 0.0
    %517 = vmatprep.subr.mxu0 0.0
    %518 = vmatpush1.msra.mxu0 0.0
    %519 = vmatprep.subr.mxu0 0.0
    %520 = vmatpush1.msra.mxu0 0.0
    %521 = vmatprep.subr.mxu0 0.0
    %522 = vmatpush1.msra.mxu0 0.0
    %523 = vmatprep.subr.mxu0 0.0
    %524 = vmatpush1.msra.mxu0 0.0
    %525 = vmatprep.subr.mxu0 0.0
    %526 = vmatpush1.msra.mxu0 0.0
    %527 = vmatprep.subr.mxu0 0.0
    %528 = vmatpush1.msra.mxu0 0.0
    %529 = vmatprep.subr.mxu0 0.0
    %530 = vmatpush1.msra.mxu0 0.0
    %531 = vmatprep.subr.mxu0 0.0
    %532 = vmatpush1.msra.mxu0 0.0
    %533 = vmatprep.subr.mxu0 0.0
    %534 = vmatpush1.msra.mxu0 0.0
    %535 = vmatprep.subr.mxu0 0.0
    %536 = vmatpush1.msra.mxu0 0.0
    %537 = vmatprep.subr.mxu0 0.0
    %538 = vmatpush1.msra.mxu0 0.0
    %539 = vmatprep.subr.mxu0 0.0
    %540 = vmatpush1.msra.mxu0 0.0
    %541 = vmatprep.subr.mxu0 0.0
    %542 = vmatpush1.msra.mxu0 0.0
    %543 = vmatprep.mubr.f32.mxu0 0.0
    %544 = vmatmul.mubr.f32.gmra.mrb[0].mxu0 %v453
    %v545 = vpop.f32.mrb[0].mxu0
    %v546 = vadd.f32 %v477, %v545
    %v547 = vpop.f32.mrb[0].mxu0
    %548 = vdwg.mxu0
    %v549 = vmax.f32 %v546, 0.0
    %v550 = vadd.f32 %v453, %v549
    %v551 = vld [vmem:[#allocation8] sm:$0xff]
    %v552 = vld [vmem:[#allocation8 + $0x8] sm:$0xff]
    %v553 = vld [vmem:[#allocation8 + $0x10] sm:$0xff]
    %v554 = vld [vmem:[#allocation8 + $0x18] sm:$0xff]
    %v555 = vld [vmem:[#allocation8 + $0x20] sm:$0xff]
    %v556 = vld [vmem:[#allocation8 + $0x28] sm:$0xff]
    %v557 = vld [vmem:[#allocation8 + $0x30] sm:$0xff]
    %v558 = vld [vmem:[#allocation8 + $0x38] sm:$0xff]
    %v559 = vld [vmem:[#allocation8 + $0x40] sm:$0xff]
    %v560 = vld [vmem:[#allocation8 + $0x48] sm:$0xff]
    %v561 = vld [vmem:[#allocation8 + $0x50] sm:$0xff]
    %v562 = vld [vmem:[#allocation8 + $0x58] sm:$0xff]
    %v563 = vld [vmem:[#allocation8 + $0x60] sm:$0xff]
    %v564 = vld [vmem:[#allocation8 + $0x68] sm:$0xff]
    %v565 = vld [vmem:[#allocation8 + $0x70] sm:$0xff]
    %v566 = vld [vmem:[#allocation8 + $0x78] sm:$0xff]
    %v567 = vld [vmem:[%s6] sm:$0x1]
    %v569 = vlaneseq
    %v570 = vshrl.u32 %v569, 7
    %v571 = vsub.s32 0, %v570
    %v572 = vrot.slane %v567, %v571
    %574 = vmatprep.subr.mxu0 0.0
    %575 = vmatpush1.msra.mxu0 %v551
    %576 = vmatprep.subr.mxu0 0.0
    %577 = vmatpush1.msra.mxu0 %v552
    %578 = vmatprep.subr.mxu0 0.0
    %579 = vmatpush1.msra.mxu0 %v553
    %580 = vmatprep.subr.mxu0 0.0
    %581 = vmatpush1.msra.mxu0 %v554
    %582 = vmatprep.subr.mxu0 0.0
    %583 = vmatpush1.msra.mxu0 %v555
    %584 = vmatprep.subr.mxu0 0.0
    %585 = vmatpush1.msra.mxu0 %v556
    %586 = vmatprep.subr.mxu0 0.0
    %587 = vmatpush1.msra.mxu0 %v557
    %588 = vmatprep.subr.mxu0 0.0
    %589 = vmatpush1.msra.mxu0 %v558
    %590 = vmatprep.subr.mxu0 0.0
    %591 = vmatpush1.msra.mxu0 %v559
    %592 = vmatprep.subr.mxu0 0.0
    %593 = vmatpush1.msra.mxu0 %v560
    %594 = vmatprep.subr.mxu0 0.0
    %595 = vmatpush1.msra.mxu0 %v561
    %596 = vmatprep.subr.mxu0 0.0
    %597 = vmatpush1.msra.mxu0 %v562
    %598 = vmatprep.subr.mxu0 0.0
    %599 = vmatpush1.msra.mxu0 %v563
    %600 = vmatprep.subr.mxu0 0.0
    %601 = vmatpush1.msra.mxu0 %v564
    %602 = vmatprep.subr.mxu0 0.0
    %603 = vmatpush1.msra.mxu0 %v565
    %604 = vmatprep.subr.mxu0 0.0
    %605 = vmatpush1.msra.mxu0 %v566
    %606 = vmatprep.subr.mxu0 0.0
    %607 = vmatpush1.msra.mxu0 0.0
    %608 = vmatprep.subr.mxu0 0.0
    %609 = vmatpush1.msra.mxu0 0.0
    %610 = vmatprep.subr.mxu0 0.0
    %611 = vmatpush1.msra.mxu0 0.0
    %612 = vmatprep.subr.mxu0 0.0
    %613 = vmatpush1.msra.mxu0 0.0
    %614 = vmatprep.subr.mxu0 0.0
    %615 = vmatpush1.msra.mxu0 0.0
    %616 = vmatprep.subr.mxu0 0.0
    %617 = vmatpush1.msra.mxu0 0.0
    %618 = vmatprep.subr.mxu0 0.0
    %619 = vmatpush1.msra.mxu0 0.0
    %620 = vmatprep.subr.mxu0 0.0
    %621 = vmatpush1.msra.mxu0 0.0
    %622 = vmatprep.subr.mxu0 0.0
    %623 = vmatpush1.msra.mxu0 0.0
    %624 = vmatprep.subr.mxu0 0.0
    %625 = vmatpush1.msra.mxu0 0.0
    %626 = vmatprep.subr.mxu0 0.0
    %627 = vmatpush1.msra.mxu0 0.0
    %628 = vmatprep.subr.mxu0 0.0
    %629 = vmatpush1.msra.mxu0 0.0
    %630 = vmatprep.subr.mxu0 0.0
    %631 = vmatpush1.msra.mxu0 0.0
    %632 = vmatprep.subr.mxu0 0.0
    %633 = vmatpush1.msra.mxu0 0.0
    %634 = vmatprep.subr.mxu0 0.0
    %635 = vmatpush1.msra.mxu0 0.0
    %636 = vmatprep.subr.mxu0 0.0
    %637 = vmatpush1.msra.mxu0 0.0
    %638 = vmatprep.mubr.f32.mxu0 0.0
    %639 = vmatmul.mubr.f32.gmra.mrb[0].mxu0 %v550
    %v640 = vpop.f32.mrb[0].mxu0
    %v641 = vadd.f32 %v572, %v640
    %v642 = vpop.f32.mrb[0].mxu0
    %643 = vdwg.mxu0
    %644 = vst [vmem:[#allocation10] sm:$0xff] %v641
    // Predicated region
    $region46: #{tpu_custom_call.1} parent=1 // pred_check
      _
    $region47: #{tpu_custom_call.1} parent=1 // pred_check_branch
      %646 = sbr.rel (0) target = $region49
    $region48: #{tpu_custom_call.1} parent=1 // pred_region
      %s648 = ssub.s32 128, 128
      %649 = vsyncadd [#allocation4], %s648
      %s651 = sshll.u32 [#allocation10], 4
      %s652 = int_to_ptr.vmem [resolvable:$true] %s651
      %654 = dma.vmem_to_hbm [thread:$0]  %s652, 128, %s7, [#allocation4]
    $region49: #{tpu_custom_call.1} parent=1 // pred_fallthru
      _
    // Predicated region
    $region50: #{tpu_custom_call.1} parent=1 // pred_check
      _
    $region51: #{tpu_custom_call.1} parent=1 // pred_check_branch
      %656 = sbr.rel (0) target = $region53
    $region52: #{tpu_custom_call.1} parent=1 // pred_region
      %657 = dma.done [#allocation4], 128
    $region53: #{tpu_custom_call.1} parent=1 // pred_fallthru
      _
    %658 = vsyncpa [#allocation3], 1
    %659 = vsyncpa [#allocation6], 1
    %660 = vsyncpa [#allocation9], 1
    %661 = vsyncpa [#allocation4], 1

// kernel: tpu_custom_call.1
$region0: #{tpu_custom_call.1}
  #allocation0 [shape = 'u32[]', space=smem, size = 0x4, offset = 0x4, fixed_abs, tag = 'smem constant byte address 0x4 - core index']
  #allocation1 [shape = 'u32[144,128]{1,0:T(1,128)}', space=vmem, size = 0x12000, scoped, tag = 'internal scratch']
  %s0 = inlined_call_operand.hbm [shape: f32[8,16], index: 0, kind: input, shape index: {}]
  %s1 = inlined_call_operand.hbm [shape: f32[16,128], index: 1, kind: input, shape index: {}]
  %s2 = inlined_call_operand.vmem [shape: f32[1,128], index: 2, kind: input, shape index: {}]
  %s3 = inlined_call_operand.hbm [shape: f32[4,128,128], index: 3, kind: input, shape index: {}]
  %s4 = inlined_call_operand.vmem [shape: f32[4,1,128], index: 4, kind: input, shape index: {}]
  %s5 = inlined_call_operand.hbm [shape: f32[128,128], index: 5, kind: input, shape index: {}]
  %s6 = inlined_call_operand.vmem [shape: f32[1,128], index: 6, kind: input, shape index: {}]
  %s7 = inlined_call_operand.hbm [shape: f32[8,128], index: 7, kind: output, shape index: {}]
  %s8 = sld [smem:[#allocation0]]
  $region54: #{tpu_custom_call.1} parent=0
    _
  %s10 = ssub.s32 1, %s8
  %s11 = scalar_select 0, %s10, %s8
  $region1: #{tpu_custom_call.1} parent=0
    #allocation2 [shape = 'u8[4096]{0}', space=vmem, size = 0x1000, scoped, tag = 'input window, operand 0, single buffered']
    #allocation3 [shape = 's32[1]{0}', space=sflag, size = 0x4, scoped, tag = 'scoped memory for tpu_custom_call.1']
    #allocation4 [shape = 's32[1]{0}', space=sflag, size = 0x4, scoped, tag = 'scoped memory for tpu_custom_call.1']
    #allocation5 [shape = 'u8[8192]{0}', space=vmem, size = 0x2000, scoped, tag = 'input window, operand 1, single buffered']
    #allocation6 [shape = 's32[1]{0}', space=sflag, size = 0x4, scoped, tag = 'scoped memory for tpu_custom_call.1']
    #allocation7 [shape = 'u8[262144]{0}', space=vmem, size = 0x40000, scoped, tag = 'input window, operand 3, single buffered']
    #allocation8 [shape = 'u8[65536]{0}', space=vmem, size = 0x10000, scoped, tag = 'input window, operand 5, single buffered']
    #allocation9 [shape = 's32[1]{0}', space=sflag, size = 0x4, scoped, tag = 'scoped memory for tpu_custom_call.1']
    #allocation10 [shape = 'u8[4096]{0}', space=vmem, size = 0x1000, scoped, tag = 'output window, operand 0, single buffered']
    %12 = vsyncpa [#allocation3], 0
    %13 = vsyncpa [#allocation6], 0
    %14 = vsyncpa [#allocation9], 0
    %15 = vsyncpa [#allocation4], 0
    // Predicated region
    $region2: #{tpu_custom_call.1} parent=1 // pred_check
      _
    $region3: #{tpu_custom_call.1} parent=1 // pred_check_branch
      %17 = sbr.rel (0) target = $region5
    $region4: #{tpu_custom_call.1} parent=1 // pred_region
      %s19 = ssub.s32 128, 128
      %20 = vsyncadd [#allocation3], %s19
      %s22 = sshll.u32 [#allocation2], 4
      %s23 = int_to_ptr.vmem [resolvable:$true] %s22
      %25 = dma.hbm_to_vmem [thread:$0]  %s0, 128, %s23, [#allocation3]
    $region5: #{tpu_custom_call.1} parent=1 // pred_fallthru
      _
    // Predicated region
    $region6: #{tpu_custom_call.1} parent=1 // pred_check
      _
    $region7: #{tpu_custom_call.1} parent=1 // pred_check_branch
      %27 = sbr.rel (0) target = $region9
    $region8: #{tpu_custom_call.1} parent=1 // pred_region
      %s29 = ssub.s32 256, 256
      %30 = vsyncadd [#allocation6], %s29
      %s31 = sshll.u32 [#allocation5], 4
      %s32 = int_to_ptr.vmem [resolvable:$true] %s31
      %37 = dma.hbm_to_vmem [thread:$0]  %s1, 256, %s32, [#allocation6], 128, 128, 8
    $region9: #{tpu_custom_call.1} parent=1 // pred_fallthru
      _
    // Predicated region
    $region10: #{tpu_custom_call.1} parent=1 // pred_check
      _
    $region11: #{tpu_custom_call.1} parent=1 // pred_check_branch
      %39 = sbr.rel (0) target = $region13
    $region12: #{tpu_custom_call.1} parent=1 // pred_region
      _
    $region13: #{tpu_custom_call.1} parent=1 // pred_fallthru
      _
    // Predicated region
    $region14: #{tpu_custom_call.1} parent=1 // pred_check
      _
    $region15: #{tpu_custom_call.1} parent=1 // pred_check_branch
      %41 = sbr.rel (0) target = $region17
    $region16: #{tpu_custom_call.1} parent=1 // pred_region
      %s43 = ssub.s32 8192, 8192
      %44 = vsyncadd [#allocation6], %s43
      %s45 = sshll.u32 [#allocation7], 4
      %s46 = int_to_ptr.vmem [resolvable:$true] %s45
      %51 = dma.hbm_to_vmem [thread:$0]  %s3, 8192, %s46, [#allocation6], 128, 128, 8
    $region17: #{tpu_custom_call.1} parent=1 // pred_fallthru
      _
    // Predicated region
    $region18: #{tpu_custom_call.1} parent=1 // pred_check
      _
    $region19: #{tpu_custom_call.1} parent=1 // pred_check_branch
      %53 = sbr.rel (0) target = $region21
    $region20: #{tpu_custom_call.1} parent=1 // pred_region
      _
    $region21: #{tpu_custom_call.1} parent=1 // pred_fallthru
      _
    // Predicated region
    $region22: #{tpu_custom_call.1} parent=1 // pred_check
      _
    $region23: #{tpu_custom_call.1} parent=1 // pred_check_branch
      %55 = sbr.rel (0) target = $region25
    $region24: #{tpu_custom_call.1} parent=1 // pred_region
      %s57 = ssub.s32 2048, 2048
      %58 = vsyncadd [#allocation9], %s57
      %s59 = sshll.u32 [#allocation8], 4
      %s60 = int_to_ptr.vmem [resolvable:$true] %s59
      %65 = dma.hbm_to_vmem [thread:$0]  %s5, 2048, %s60, [#allocation9], 128, 128, 8
    $region25: #{tpu_custom_call.1} parent=1 // pred_fallthru
      _
    // Predicated region
    $region26: #{tpu_custom_call.1} parent=1 // pred_check
      _
    $region27: #{tpu_custom_call.1} parent=1 // pred_check_branch
      %67 = sbr.rel (0) target = $region29
    $region28: #{tpu_custom_call.1} parent=1 // pred_region
      _
    $region29: #{tpu_custom_call.1} parent=1 // pred_fallthru
      _
    // Predicated region
    $region30: #{tpu_custom_call.1} parent=1 // pred_check
      _
    $region31: #{tpu_custom_call.1} parent=1 // pred_check_branch
      %69 = sbr.rel (0) target = $region33
    $region32: #{tpu_custom_call.1} parent=1 // pred_region
      %70 = dma.done [#allocation3], 128
    $region33: #{tpu_custom_call.1} parent=1 // pred_fallthru
      _
    // Predicated region
    $region34: #{tpu_custom_call.1} parent=1 // pred_check
      _
    $region35: #{tpu_custom_call.1} parent=1 // pred_check_branch
      %72 = sbr.rel (0) target = $region37
    $region36: #{tpu_custom_call.1} parent=1 // pred_region
      %73 = dma.done [#allocation6], 256
    $region37: #{tpu_custom_call.1} parent=1 // pred_fallthru
      _
    // Predicated region
    $region38: #{tpu_custom_call.1} parent=1 // pred_check
      _
    $region39: #{tpu_custom_call.1} parent=1 // pred_check_branch
      %75 = sbr.rel (0) target = $region41
    $region40: #{tpu_custom_call.1} parent=1 // pred_region
      %76 = dma.done [#allocation6], 8192
    $region41: #{tpu_custom_call.1} parent=1 // pred_fallthru
      _
    // Predicated region
    $region42: #{tpu_custom_call.1} parent=1 // pred_check
      _
    $region43: #{tpu_custom_call.1} parent=1 // pred_check_branch
      %78 = sbr.rel (0) target = $region45
    $region44: #{tpu_custom_call.1} parent=1 // pred_region
      %79 = dma.done [#allocation9], 2048
    $region45: #{tpu_custom_call.1} parent=1 // pred_fallthru
      _
    %v80 = vld [vmem:[#allocation2] sm:$0xff]
    %v81 = vld [vmem:[#allocation5] sm:$0xff]
    %v82 = vld [vmem:[#allocation5 + $0x8] sm:$0xff]
    %v83 = vld [vmem:[%s2] sm:$0x1]
    %v85 = vlaneseq
    %v86 = vshrl.u32 %v85, 7
    %v87 = vsub.s32 0, %v86
    %v88 = vrot.slane %v83, %v87
    %vm90 = vcmask 130048
    %v92 = vsel %vm90, %v80, 0
    %94 = vmatprep.subr.mxu0 0.0
    %95 = vmatpush1.msra.mxu0 %v81
    %96 = vmatprep.subr.mxu0 0.0
    %97 = vmatpush1.msra.mxu0 %v82
    %98 = vmatprep.subr.mxu0 0.0
    %99 = vmatpush1.msra.mxu0 0.0
    %100 = vmatprep.subr.mxu0 0.0
    %101 = vmatpush1.msra.mxu0 0.0
    %102 = vmatprep.subr.mxu0 0.0
    %103 = vmatpush1.msra.mxu0 0.0
    %104 = vmatprep.subr.mxu0 0.0
    %105 = vmatpush1.msra.mxu0 0.0
    %106 = vmatprep.subr.mxu0 0.0
    %107 = vmatpush1.msra.mxu0 0.0
    %108 = vmatprep.subr.mxu0 0.0
    %109 = vmatpush1.msra.mxu0 0.0
    %110 = vmatprep.subr.mxu0 0.0
    %111 = vmatpush1.msra.mxu0 0.0
    %112 = vmatprep.subr.mxu0 0.0
    %113 = vmatpush1.msra.mxu0 0.0
    %114 = vmatprep.subr.mxu0 0.0
    %115 = vmatpush1.msra.mxu0 0.0
    %116 = vmatprep.subr.mxu0 0.0
    %117 = vmatpush1.msra.mxu0 0.0
    %118 = vmatprep.subr.mxu0 0.0
    %119 = vmatpush1.msra.mxu0 0.0
    %120 = vmatprep.subr.mxu0 0.0
    %121 = vmatpush1.msra.mxu0 0.0
    %122 = vmatprep.subr.mxu0 0.0
    %123 = vmatpush1.msra.mxu0 0.0
    %124 = vmatprep.subr.mxu0 0.0
    %125 = vmatpush1.msra.mxu0 0.0
    %126 = vmatprep.subr.mxu0 0.0
    %127 = vmatpush1.msra.mxu0 0.0
    %128 = vmatprep.subr.mxu0 0.0
    %129 = vmatpush1.msra.mxu0 0.0
    %130 = vmatprep.subr.mxu0 0.0
    %131 = vmatpush1.msra.mxu0 0.0
    %132 = vmatprep.subr.mxu0 0.0
    %133 = vmatpush1.msra.mxu0 0.0
    %134 = vmatprep.subr.mxu0 0.0
    %135 = vmatpush1.msra.mxu0 0.0
    %136 = vmatprep.subr.mxu0 0.0
    %137 = vmatpush1.msra.mxu0 0.0
    %138 = vmatprep.subr.mxu0 0.0
    %139 = vmatpush1.msra.mxu0 0.0
    %140 = vmatprep.subr.mxu0 0.0
    %141 = vmatpush1.msra.mxu0 0.0
    %142 = vmatprep.subr.mxu0 0.0
    %143 = vmatpush1.msra.mxu0 0.0
    %144 = vmatprep.subr.mxu0 0.0
    %145 = vmatpush1.msra.mxu0 0.0
    %146 = vmatprep.subr.mxu0 0.0
    %147 = vmatpush1.msra.mxu0 0.0
    %148 = vmatprep.subr.mxu0 0.0
    %149 = vmatpush1.msra.mxu0 0.0
    %150 = vmatprep.subr.mxu0 0.0
    %151 = vmatpush1.msra.mxu0 0.0
    %152 = vmatprep.subr.mxu0 0.0
    %153 = vmatpush1.msra.mxu0 0.0
    %154 = vmatprep.subr.mxu0 0.0
    %155 = vmatpush1.msra.mxu0 0.0
    %156 = vmatprep.subr.mxu0 0.0
    %157 = vmatpush1.msra.mxu0 0.0
    %158 = vmatprep.mubr.f32.mxu0 0.0
    %159 = vmatmul.mubr.f32.gmra.mrb[0].mxu0 %v92
    %v160 = vpop.f32.mrb[0].mxu0
    %v161 = vadd.f32 %v88, %v160
    %v162 = vpop.f32.mrb[0].mxu0
    %163 = vdwg.mxu0
    %v164 = vmax.f32 %v161, 0.0
    %v165 = vld [vmem:[#allocation7] sm:$0xff]
    %v166 = vld [vmem:[#allocation7 + $0x8] sm:$0xff]
    %v167 = vld [vmem:[#allocation7 + $0x10] sm:$0xff]
    %v168 = vld [vmem:[#allocation7 + $0x18] sm:$0xff]
    %v169 = vld [vmem:[#allocation7 + $0x20] sm:$0xff]
    %v170 = vld [vmem:[#allocation7 + $0x28] sm:$0xff]
    %v171 = vld [vmem:[#allocation7 + $0x30] sm:$0xff]
    %v172 = vld [vmem:[#allocation7 + $0x38] sm:$0xff]
    %v173 = vld [vmem:[#allocation7 + $0x40] sm:$0xff]
    %v174 = vld [vmem:[#allocation7 + $0x48] sm:$0xff]
    %v175 = vld [vmem:[#allocation7 + $0x50] sm:$0xff]
    %v176 = vld [vmem:[#allocation7 + $0x58] sm:$0xff]
    %v177 = vld [vmem:[#allocation7 + $0x60] sm:$0xff]
    %v178 = vld [vmem:[#allocation7 + $0x68] sm:$0xff]
    %v179 = vld [vmem:[#allocation7 + $0x70] sm:$0xff]
    %v180 = vld [vmem:[#allocation7 + $0x78] sm:$0xff]
    %v181 = vld [vmem:[%s4] sm:$0x1]
    %v183 = vlaneseq
    %v184 = vshrl.u32 %v183, 7
    %v185 = vsub.s32 0, %v184
    %v186 = vrot.slane %v181, %v185
    %188 = vmatprep.subr.mxu0 0.0
    %189 = vmatpush1.msra.mxu0 %v165
    %190 = vmatprep.subr.mxu0 0.0
    %191 = vmatpush1.msra.mxu0 %v166
    %192 = vmatprep.subr.mxu0 0.0
    %193 = vmatpush1.msra.mxu0 %v167
    %194 = vmatprep.subr.mxu0 0.0
    %195 = vmatpush1.msra.mxu0 %v168
    %196 = vmatprep.subr.mxu0 0.0
    %197 = vmatpush1.msra.mxu0 %v169
    %198 = vmatprep.subr.mxu0 0.0
    %199 = vmatpush1.msra.mxu0 %v170
    %200 = vmatprep.subr.mxu0 0.0
    %201 = vmatpush1.msra.mxu0 %v171
    %202 = vmatprep.subr.mxu0 0.0
    %203 = vmatpush1.msra.mxu0 %v172
    %204 = vmatprep.subr.mxu0 0.0
    %205 = vmatpush1.msra.mxu0 %v173
    %206 = vmatprep.subr.mxu0 0.0
    %207 = vmatpush1.msra.mxu0 %v174
    %208 = vmatprep.subr.mxu0 0.0
    %209 = vmatpush1.msra.mxu0 %v175
    %210 = vmatprep.subr.mxu0 0.0
    %211 = vmatpush1.msra.mxu0 %v176
    %212 = vmatprep.subr.mxu0 0.0
    %213 = vmatpush1.msra.mxu0 %v177
    %214 = vmatprep.subr.mxu0 0.0
    %215 = vmatpush1.msra.mxu0 %v178
    %216 = vmatprep.subr.mxu0 0.0
    %217 = vmatpush1.msra.mxu0 %v179
    %218 = vmatprep.subr.mxu0 0.0
    %219 = vmatpush1.msra.mxu0 %v180
    %220 = vmatprep.subr.mxu0 0.0
    %221 = vmatpush1.msra.mxu0 0.0
    %222 = vmatprep.subr.mxu0 0.0
    %223 = vmatpush1.msra.mxu0 0.0
    %224 = vmatprep.subr.mxu0 0.0
    %225 = vmatpush1.msra.mxu0 0.0
    %226 = vmatprep.subr.mxu0 0.0
    %227 = vmatpush1.msra.mxu0 0.0
    %228 = vmatprep.subr.mxu0 0.0
    %229 = vmatpush1.msra.mxu0 0.0
    %230 = vmatprep.subr.mxu0 0.0
    %231 = vmatpush1.msra.mxu0 0.0
    %232 = vmatprep.subr.mxu0 0.0
    %233 = vmatpush1.msra.mxu0 0.0
    %234 = vmatprep.subr.mxu0 0.0
    %235 = vmatpush1.msra.mxu0 0.0
    %236 = vmatprep.subr.mxu0 0.0
    %237 = vmatpush1.msra.mxu0 0.0
    %238 = vmatprep.subr.mxu0 0.0
    %239 = vmatpush1.msra.mxu0 0.0
    %240 = vmatprep.subr.mxu0 0.0
    %241 = vmatpush1.msra.mxu0 0.0
    %242 = vmatprep.subr.mxu0 0.0
    %243 = vmatpush1.msra.mxu0 0.0
    %244 = vmatprep.subr.mxu0 0.0
    %245 = vmatpush1.msra.mxu0 0.0
    %246 = vmatprep.subr.mxu0 0.0
    %247 = vmatpush1.msra.mxu0 0.0
    %248 = vmatprep.subr.mxu0 0.0
    %249 = vmatpush1.msra.mxu0 0.0
    %250 = vmatprep.subr.mxu0 0.0
    %251 = vmatpush1.msra.mxu0 0.0
    %252 = vmatprep.mubr.f32.mxu0 0.0
    %253 = vmatmul.mubr.f32.gmra.mrb[0].mxu0 %v164
    %v254 = vpop.f32.mrb[0].mxu0
    %v255 = vadd.f32 %v186, %v254
    %v256 = vpop.f32.mrb[0].mxu0
    %257 = vdwg.mxu0
    %v258 = vmax.f32 %v255, 0.0
    %v259 = vadd.f32 %v164, %v258
    %s260 = scalar_lea.vmem [#allocation7], 128
    %v261 = vld [vmem:[%s260] sm:$0xff]
    %v262 = vld [vmem:[%s260 + $0x8] sm:$0xff]
    %v263 = vld [vmem:[%s260 + $0x10] sm:$0xff]
    %v264 = vld [vmem:[%s260 + $0x18] sm:$0xff]
    %v265 = vld [vmem:[%s260 + $0x20] sm:$0xff]
    %v266 = vld [vmem:[%s260 + $0x28] sm:$0xff]
    %v267 = vld [vmem:[%s260 + $0x30] sm:$0xff]
    %v268 = vld [vmem:[%s260 + $0x38] sm:$0xff]
    %v269 = vld [vmem:[%s260 + $0x40] sm:$0xff]
    %v270 = vld [vmem:[%s260 + $0x48] sm:$0xff]
    %v271 = vld [vmem:[%s260 + $0x50] sm:$0xff]
    %v272 = vld [vmem:[%s260 + $0x58] sm:$0xff]
    %v273 = vld [vmem:[%s260 + $0x60] sm:$0xff]
    %v274 = vld [vmem:[%s260 + $0x68] sm:$0xff]
    %v275 = vld [vmem:[%s260 + $0x70] sm:$0xff]
    %v276 = vld [vmem:[%s260 + $0x78] sm:$0xff]
    %s277 = scalar_lea.vmem %s4, 1
    %v278 = vld [vmem:[%s277] sm:$0x1]
    %v280 = vlaneseq
    %v281 = vshrl.u32 %v280, 7
    %v282 = vsub.s32 0, %v281
    %v283 = vrot.slane %v278, %v282
    %285 = vmatprep.subr.mxu0 0.0
    %286 = vmatpush1.msra.mxu0 %v261
    %287 = vmatprep.subr.mxu0 0.0
    %288 = vmatpush1.msra.mxu0 %v262
    %289 = vmatprep.subr.mxu0 0.0
    %290 = vmatpush1.msra.mxu0 %v263
    %291 = vmatprep.subr.mxu0 0.0
    %292 = vmatpush1.msra.mxu0 %v264
    %293 = vmatprep.subr.mxu0 0.0
    %294 = vmatpush1.msra.mxu0 %v265
    %295 = vmatprep.subr.mxu0 0.0
    %296 = vmatpush1.msra.mxu0 %v266
    %297 = vmatprep.subr.mxu0 0.0
    %298 = vmatpush1.msra.mxu0 %v267
    %299 = vmatprep.subr.mxu0 0.0
    %300 = vmatpush1.msra.mxu0 %v268
    %301 = vmatprep.subr.mxu0 0.0
    %302 = vmatpush1.msra.mxu0 %v269
    %303 = vmatprep.subr.mxu0 0.0
    %304 = vmatpush1.msra.mxu0 %v270
    %305 = vmatprep.subr.mxu0 0.0
    %306 = vmatpush1.msra.mxu0 %v271
    %307 = vmatprep.subr.mxu0 0.0
    %308 = vmatpush1.msra.mxu0 %v272
    %309 = vmatprep.subr.mxu0 0.0
    %310 = vmatpush1.msra.mxu0 %v273
    %311 = vmatprep.subr.mxu0 0.0
    %312 = vmatpush1.msra.mxu0 %v274
    %313 = vmatprep.subr.mxu0 0.0
    %314 = vmatpush1.msra.mxu0 %v275
    %315 = vmatprep.subr.mxu0 0.0
    %316 = vmatpush1.msra.mxu0 %v276
    %317 = vmatprep.subr.mxu0 0.0
    %318 = vmatpush1.msra.mxu0 0.0
    %319 = vmatprep.subr.mxu0 0.0
    %320 = vmatpush1.msra.mxu0 0.0
    %321 = vmatprep.subr.mxu0 0.0
    %322 = vmatpush1.msra.mxu0 0.0
    %323 = vmatprep.subr.mxu0 0.0
    %324 = vmatpush1.msra.mxu0 0.0
    %325 = vmatprep.subr.mxu0 0.0
    %326 = vmatpush1.msra.mxu0 0.0
    %327 = vmatprep.subr.mxu0 0.0
    %328 = vmatpush1.msra.mxu0 0.0
    %329 = vmatprep.subr.mxu0 0.0
    %330 = vmatpush1.msra.mxu0 0.0
    %331 = vmatprep.subr.mxu0 0.0
    %332 = vmatpush1.msra.mxu0 0.0
    %333 = vmatprep.subr.mxu0 0.0
    %334 = vmatpush1.msra.mxu0 0.0
    %335 = vmatprep.subr.mxu0 0.0
    %336 = vmatpush1.msra.mxu0 0.0
    %337 = vmatprep.subr.mxu0 0.0
    %338 = vmatpush1.msra.mxu0 0.0
    %339 = vmatprep.subr.mxu0 0.0
    %340 = vmatpush1.msra.mxu0 0.0
    %341 = vmatprep.subr.mxu0 0.0
    %342 = vmatpush1.msra.mxu0 0.0
    %343 = vmatprep.subr.mxu0 0.0
    %344 = vmatpush1.msra.mxu0 0.0
    %345 = vmatprep.subr.mxu0 0.0
    %346 = vmatpush1.msra.mxu0 0.0
    %347 = vmatprep.subr.mxu0 0.0
    %348 = vmatpush1.msra.mxu0 0.0
    %349 = vmatprep.mubr.f32.mxu0 0.0
    %350 = vmatmul.mubr.f32.gmra.mrb[0].mxu0 %v259
    %v351 = vpop.f32.mrb[0].mxu0
    %v352 = vadd.f32 %v283, %v351
    %v353 = vpop.f32.mrb[0].mxu0
    %354 = vdwg.mxu0
    %v355 = vmax.f32 %v352, 0.0
    %v356 = vadd.f32 %v259, %v355
    %s357 = scalar_lea.vmem [#allocation7], 256
    %v358 = vld [vmem:[%s357] sm:$0xff]
    %v359 = vld [vmem:[%s357 + $0x8] sm:$0xff]
    %v360 = vld [vmem:[%s357 + $0x10] sm:$0xff]
    %v361 = vld [vmem:[%s357 + $0x18] sm:$0xff]
    %v362 = vld [vmem:[%s357 + $0x20] sm:$0xff]
    %v363 = vld [vmem:[%s357 + $0x28] sm:$0xff]
    %v364 = vld [vmem:[%s357 + $0x30] sm:$0xff]
    %v365 = vld [vmem:[%s357 + $0x38] sm:$0xff]
    %v366 = vld [vmem:[%s357 + $0x40] sm:$0xff]
    %v367 = vld [vmem:[%s357 + $0x48] sm:$0xff]
    %v368 = vld [vmem:[%s357 + $0x50] sm:$0xff]
    %v369 = vld [vmem:[%s357 + $0x58] sm:$0xff]
    %v370 = vld [vmem:[%s357 + $0x60] sm:$0xff]
    %v371 = vld [vmem:[%s357 + $0x68] sm:$0xff]
    %v372 = vld [vmem:[%s357 + $0x70] sm:$0xff]
    %v373 = vld [vmem:[%s357 + $0x78] sm:$0xff]
    %s374 = scalar_lea.vmem %s4, 2
    %v375 = vld [vmem:[%s374] sm:$0x1]
    %v377 = vlaneseq
    %v378 = vshrl.u32 %v377, 7
    %v379 = vsub.s32 0, %v378
    %v380 = vrot.slane %v375, %v379
    %382 = vmatprep.subr.mxu0 0.0
    %383 = vmatpush1.msra.mxu0 %v358
    %384 = vmatprep.subr.mxu0 0.0
    %385 = vmatpush1.msra.mxu0 %v359
    %386 = vmatprep.subr.mxu0 0.0
    %387 = vmatpush1.msra.mxu0 %v360
    %388 = vmatprep.subr.mxu0 0.0
    %389 = vmatpush1.msra.mxu0 %v361
    %390 = vmatprep.subr.mxu0 0.0
    %391 = vmatpush1.msra.mxu0 %v362
    %392 = vmatprep.subr.mxu0 0.0
    %393 = vmatpush1.msra.mxu0 %v363
    %394 = vmatprep.subr.mxu0 0.0
    %395 = vmatpush1.msra.mxu0 %v364
    %396 = vmatprep.subr.mxu0 0.0
    %397 = vmatpush1.msra.mxu0 %v365
    %398 = vmatprep.subr.mxu0 0.0
    %399 = vmatpush1.msra.mxu0 %v366
    %400 = vmatprep.subr.mxu0 0.0
    %401 = vmatpush1.msra.mxu0 %v367
    %402 = vmatprep.subr.mxu0 0.0
    %403 = vmatpush1.msra.mxu0 %v368
    %404 = vmatprep.subr.mxu0 0.0
    %405 = vmatpush1.msra.mxu0 %v369
    %406 = vmatprep.subr.mxu0 0.0
    %407 = vmatpush1.msra.mxu0 %v370
    %408 = vmatprep.subr.mxu0 0.0
    %409 = vmatpush1.msra.mxu0 %v371
    %410 = vmatprep.subr.mxu0 0.0
    %411 = vmatpush1.msra.mxu0 %v372
    %412 = vmatprep.subr.mxu0 0.0
    %413 = vmatpush1.msra.mxu0 %v373
    %414 = vmatprep.subr.mxu0 0.0
    %415 = vmatpush1.msra.mxu0 0.0
    %416 = vmatprep.subr.mxu0 0.0
    %417 = vmatpush1.msra.mxu0 0.0
    %418 = vmatprep.subr.mxu0 0.0
    %419 = vmatpush1.msra.mxu0 0.0
    %420 = vmatprep.subr.mxu0 0.0
    %421 = vmatpush1.msra.mxu0 0.0
    %422 = vmatprep.subr.mxu0 0.0
    %423 = vmatpush1.msra.mxu0 0.0
    %424 = vmatprep.subr.mxu0 0.0
    %425 = vmatpush1.msra.mxu0 0.0
    %426 = vmatprep.subr.mxu0 0.0
    %427 = vmatpush1.msra.mxu0 0.0
    %428 = vmatprep.subr.mxu0 0.0
    %429 = vmatpush1.msra.mxu0 0.0
    %430 = vmatprep.subr.mxu0 0.0
    %431 = vmatpush1.msra.mxu0 0.0
    %432 = vmatprep.subr.mxu0 0.0
    %433 = vmatpush1.msra.mxu0 0.0
    %434 = vmatprep.subr.mxu0 0.0
    %435 = vmatpush1.msra.mxu0 0.0
    %436 = vmatprep.subr.mxu0 0.0
    %437 = vmatpush1.msra.mxu0 0.0
    %438 = vmatprep.subr.mxu0 0.0
    %439 = vmatpush1.msra.mxu0 0.0
    %440 = vmatprep.subr.mxu0 0.0
    %441 = vmatpush1.msra.mxu0 0.0
    %442 = vmatprep.subr.mxu0 0.0
    %443 = vmatpush1.msra.mxu0 0.0
    %444 = vmatprep.subr.mxu0 0.0
    %445 = vmatpush1.msra.mxu0 0.0
    %446 = vmatprep.mubr.f32.mxu0 0.0
    %447 = vmatmul.mubr.f32.gmra.mrb[0].mxu0 %v356
    %v448 = vpop.f32.mrb[0].mxu0
    %v449 = vadd.f32 %v380, %v448
    %v450 = vpop.f32.mrb[0].mxu0
    %451 = vdwg.mxu0
    %v452 = vmax.f32 %v449, 0.0
    %v453 = vadd.f32 %v356, %v452
    %s454 = scalar_lea.vmem [#allocation7], 384
    %v455 = vld [vmem:[%s454] sm:$0xff]
    %v456 = vld [vmem:[%s454 + $0x8] sm:$0xff]
    %v457 = vld [vmem:[%s454 + $0x10] sm:$0xff]
    %v458 = vld [vmem:[%s454 + $0x18] sm:$0xff]
    %v459 = vld [vmem:[%s454 + $0x20] sm:$0xff]
    %v460 = vld [vmem:[%s454 + $0x28] sm:$0xff]
    %v461 = vld [vmem:[%s454 + $0x30] sm:$0xff]
    %v462 = vld [vmem:[%s454 + $0x38] sm:$0xff]
    %v463 = vld [vmem:[%s454 + $0x40] sm:$0xff]
    %v464 = vld [vmem:[%s454 + $0x48] sm:$0xff]
    %v465 = vld [vmem:[%s454 + $0x50] sm:$0xff]
    %v466 = vld [vmem:[%s454 + $0x58] sm:$0xff]
    %v467 = vld [vmem:[%s454 + $0x60] sm:$0xff]
    %v468 = vld [vmem:[%s454 + $0x68] sm:$0xff]
    %v469 = vld [vmem:[%s454 + $0x70] sm:$0xff]
    %v470 = vld [vmem:[%s454 + $0x78] sm:$0xff]
    %s471 = scalar_lea.vmem %s4, 3
    %v472 = vld [vmem:[%s471] sm:$0x1]
    %v474 = vlaneseq
    %v475 = vshrl.u32 %v474, 7
    %v476 = vsub.s32 0, %v475
    %v477 = vrot.slane %v472, %v476
    %479 = vmatprep.subr.mxu0 0.0
    %480 = vmatpush1.msra.mxu0 %v455
    %481 = vmatprep.subr.mxu0 0.0
    %482 = vmatpush1.msra.mxu0 %v456
    %483 = vmatprep.subr.mxu0 0.0
    %484 = vmatpush1.msra.mxu0 %v457
    %485 = vmatprep.subr.mxu0 0.0
    %486 = vmatpush1.msra.mxu0 %v458
    %487 = vmatprep.subr.mxu0 0.0
    %488 = vmatpush1.msra.mxu0 %v459
    %489 = vmatprep.subr.mxu0 0.0
    %490 = vmatpush1.msra.mxu0 %v460
    %491 = vmatprep.subr.mxu0 0.0
    %492 = vmatpush1.msra.mxu0 %v461
    %493 = vmatprep.subr.mxu0 0.0
    %494 = vmatpush1.msra.mxu0 %v462
    %495 = vmatprep.subr.mxu0 0.0
    %496 = vmatpush1.msra.mxu0 %v463
    %497 = vmatprep.subr.mxu0 0.0
    %498 = vmatpush1.msra.mxu0 %v464
    %499 = vmatprep.subr.mxu0 0.0
    %500 = vmatpush1.msra.mxu0 %v465
    %501 = vmatprep.subr.mxu0 0.0
    %502 = vmatpush1.msra.mxu0 %v466
    %503 = vmatprep.subr.mxu0 0.0
    %504 = vmatpush1.msra.mxu0 %v467
    %505 = vmatprep.subr.mxu0 0.0
    %506 = vmatpush1.msra.mxu0 %v468
    %507 = vmatprep.subr.mxu0 0.0
    %508 = vmatpush1.msra.mxu0 %v469
    %509 = vmatprep.subr.mxu0 0.0
    %510 = vmatpush1.msra.mxu0 %v470
    %511 = vmatprep.subr.mxu0 0.0
    %512 = vmatpush1.msra.mxu0 0.0
    %513 = vmatprep.subr.mxu0 0.0
    %514 = vmatpush1.msra.mxu0 0.0
    %515 = vmatprep.subr.mxu0 0.0
    %516 = vmatpush1.msra.mxu0 0.0
    %517 = vmatprep.subr.mxu0 0.0
    %518 = vmatpush1.msra.mxu0 0.0
    %519 = vmatprep.subr.mxu0 0.0
    %520 = vmatpush1.msra.mxu0 0.0
    %521 = vmatprep.subr.mxu0 0.0
    %522 = vmatpush1.msra.mxu0 0.0
    %523 = vmatprep.subr.mxu0 0.0
    %524 = vmatpush1.msra.mxu0 0.0
    %525 = vmatprep.subr.mxu0 0.0
    %526 = vmatpush1.msra.mxu0 0.0
    %527 = vmatprep.subr.mxu0 0.0
    %528 = vmatpush1.msra.mxu0 0.0
    %529 = vmatprep.subr.mxu0 0.0
    %530 = vmatpush1.msra.mxu0 0.0
    %531 = vmatprep.subr.mxu0 0.0
    %532 = vmatpush1.msra.mxu0 0.0
    %533 = vmatprep.subr.mxu0 0.0
    %534 = vmatpush1.msra.mxu0 0.0
    %535 = vmatprep.subr.mxu0 0.0
    %536 = vmatpush1.msra.mxu0 0.0
    %537 = vmatprep.subr.mxu0 0.0
    %538 = vmatpush1.msra.mxu0 0.0
    %539 = vmatprep.subr.mxu0 0.0
    %540 = vmatpush1.msra.mxu0 0.0
    %541 = vmatprep.subr.mxu0 0.0
    %542 = vmatpush1.msra.mxu0 0.0
    %543 = vmatprep.mubr.f32.mxu0 0.0
    %544 = vmatmul.mubr.f32.gmra.mrb[0].mxu0 %v453
    %v545 = vpop.f32.mrb[0].mxu0
    %v546 = vadd.f32 %v477, %v545
    %v547 = vpop.f32.mrb[0].mxu0
    %548 = vdwg.mxu0
    %v549 = vmax.f32 %v546, 0.0
    %v550 = vadd.f32 %v453, %v549
    %v551 = vld [vmem:[#allocation8] sm:$0xff]
    %v552 = vld [vmem:[#allocation8 + $0x8] sm:$0xff]
    %v553 = vld [vmem:[#allocation8 + $0x10] sm:$0xff]
    %v554 = vld [vmem:[#allocation8 + $0x18] sm:$0xff]
    %v555 = vld [vmem:[#allocation8 + $0x20] sm:$0xff]
    %v556 = vld [vmem:[#allocation8 + $0x28] sm:$0xff]
    %v557 = vld [vmem:[#allocation8 + $0x30] sm:$0xff]
    %v558 = vld [vmem:[#allocation8 + $0x38] sm:$0xff]
    %v559 = vld [vmem:[#allocation8 + $0x40] sm:$0xff]
    %v560 = vld [vmem:[#allocation8 + $0x48] sm:$0xff]
    %v561 = vld [vmem:[#allocation8 + $0x50] sm:$0xff]
    %v562 = vld [vmem:[#allocation8 + $0x58] sm:$0xff]
    %v563 = vld [vmem:[#allocation8 + $0x60] sm:$0xff]
    %v564 = vld [vmem:[#allocation8 + $0x68] sm:$0xff]
    %v565 = vld [vmem:[#allocation8 + $0x70] sm:$0xff]
    %v566 = vld [vmem:[#allocation8 + $0x78] sm:$0xff]
    %v567 = vld [vmem:[%s6] sm:$0x1]
    %v569 = vlaneseq
    %v570 = vshrl.u32 %v569, 7
    %v571 = vsub.s32 0, %v570
    %v572 = vrot.slane %v567, %v571
    %574 = vmatprep.subr.mxu0 0.0
    %575 = vmatpush1.msra.mxu0 %v551
    %576 = vmatprep.subr.mxu0 0.0
    %577 = vmatpush1.msra.mxu0 %v552
    %578 = vmatprep.subr.mxu0 0.0
    %579 = vmatpush1.msra.mxu0 %v553
    %580 = vmatprep.subr.mxu0 0.0
    %581 = vmatpush1.msra.mxu0 %v554
    %582 = vmatprep.subr.mxu0 0.0
    %583 = vmatpush1.msra.mxu0 %v555
    %584 = vmatprep.subr.mxu0 0.0
    %585 = vmatpush1.msra.mxu0 %v556
    %586 = vmatprep.subr.mxu0 0.0
    %587 = vmatpush1.msra.mxu0 %v557
    %588 = vmatprep.subr.mxu0 0.0
    %589 = vmatpush1.msra.mxu0 %v558
    %590 = vmatprep.subr.mxu0 0.0
    %591 = vmatpush1.msra.mxu0 %v559
    %592 = vmatprep.subr.mxu0 0.0
    %593 = vmatpush1.msra.mxu0 %v560
    %594 = vmatprep.subr.mxu0 0.0
    %595 = vmatpush1.msra.mxu0 %v561
    %596 = vmatprep.subr.mxu0 0.0
    %597 = vmatpush1.msra.mxu0 %v562
    %598 = vmatprep.subr.mxu0 0.0
    %599 = vmatpush1.msra.mxu0 %v563
    %600 = vmatprep.subr.mxu0 0.0
    %601 = vmatpush1.msra.mxu0 %v564
    %602 = vmatprep.subr.mxu0 0.0
    %603 = vmatpush1.msra.mxu0 %v565
    %604 = vmatprep.subr.mxu0 0.0
    %605 = vmatpush1.msra.mxu0 %v566
    %606 = vmatprep.subr.mxu0 0.0
    %607 = vmatpush1.msra.mxu0 0.0
    %608 = vmatprep.subr.mxu0 0.0
    %609 = vmatpush1.msra.mxu0 0.0
    %610 = vmatprep.subr.mxu0 0.0
    %611 = vmatpush1.msra.mxu0 0.0
    %612 = vmatprep.subr.mxu0 0.0
    %613 = vmatpush1.msra.mxu0 0.0
    %614 = vmatprep.subr.mxu0 0.0
    %615 = vmatpush1.msra.mxu0 0.0
    %616 = vmatprep.subr.mxu0 0.0
    %617 = vmatpush1.msra.mxu0 0.0
    %618 = vmatprep.subr.mxu0 0.0
    %619 = vmatpush1.msra.mxu0 0.0
    %620 = vmatprep.subr.mxu0 0.0
    %621 = vmatpush1.msra.mxu0 0.0
    %622 = vmatprep.subr.mxu0 0.0
    %623 = vmatpush1.msra.mxu0 0.0
    %624 = vmatprep.subr.mxu0 0.0
    %625 = vmatpush1.msra.mxu0 0.0
    %626 = vmatprep.subr.mxu0 0.0
    %627 = vmatpush1.msra.mxu0 0.0
    %628 = vmatprep.subr.mxu0 0.0
    %629 = vmatpush1.msra.mxu0 0.0
    %630 = vmatprep.subr.mxu0 0.0
    %631 = vmatpush1.msra.mxu0 0.0
    %632 = vmatprep.subr.mxu0 0.0
    %633 = vmatpush1.msra.mxu0 0.0
    %634 = vmatprep.subr.mxu0 0.0
    %635 = vmatpush1.msra.mxu0 0.0
    %636 = vmatprep.subr.mxu0 0.0
    %637 = vmatpush1.msra.mxu0 0.0
    %638 = vmatprep.mubr.f32.mxu0 0.0
    %639 = vmatmul.mubr.f32.gmra.mrb[0].mxu0 %v550
    %v640 = vpop.f32.mrb[0].mxu0
    %v641 = vadd.f32 %v572, %v640
    %v642 = vpop.f32.mrb[0].mxu0
    %643 = vdwg.mxu0
    %644 = vst [vmem:[#allocation10] sm:$0xff] %v641
    // Predicated region
    $region46: #{tpu_custom_call.1} parent=1 // pred_check
      _
    $region47: #{tpu_custom_call.1} parent=1 // pred_check_branch
      %646 = sbr.rel (0) target = $region49
    $region48: #{tpu_custom_call.1} parent=1 // pred_region
      %s648 = ssub.s32 128, 128
      %649 = vsyncadd [#allocation4], %s648
      %s651 = sshll.u32 [#allocation10], 4
      %s652 = int_to_ptr.vmem [resolvable:$true] %s651
      %654 = dma.vmem_to_hbm [thread:$0]  %s652, 128, %s7, [#allocation4]
    $region49: #{tpu_custom_call.1} parent=1 // pred_fallthru
      _
    // Predicated region
    $region50: #{tpu_custom_call.1} parent=1 // pred_check
      _
    $region51: #{tpu_custom_call.1} parent=1 // pred_check_branch
      %656 = sbr.rel (0) target = $region53
    $region52: #{tpu_custom_call.1} parent=1 // pred_region
      %657 = dma.done [#allocation4], 128
    $region53: #{tpu_custom_call.1} parent=1 // pred_fallthru
      _
    %658 = vsyncpa [#allocation3], 1
    %659 = vsyncpa [#allocation6], 1
    %660 = vsyncpa [#allocation9], 1
    %661 = vsyncpa [#allocation4], 1

</llo_original>
